<compile_context>
chip_gen: v6e
topology: v6e:2x2x1
jax: 0.10.0
libtpu: 0.0.40
codegen_flags: <defaults>
</compile_context>

<pallas_src>
import functools

import jax
import jax.numpy as jnp
from jax.experimental import pallas as pl
from jax.experimental.pallas import tpu as pltpu


def _sublane_multiple(*dtypes):
    """Minimum sublane multiple: 8 for 4-byte, 16 for 2-byte, 32 for 1-byte."""
    m = 8
    for dt in dtypes:
        m = max(m, 32 // jnp.dtype(dt).itemsize)
    return m


def _round_up(x, m):
    return ((x + m - 1) // m) * m


# ----------------------------------------------------------------------------
# clip_attack: per-row L2-norm clipping (reduction + elementwise), in Pallas.
# ----------------------------------------------------------------------------
def _clip_kernel(epsilon, attack_ref, out_ref):
    a = attack_ref[...].astype(jnp.float32)                     # (tm, D)
    norms = jnp.sqrt(jnp.sum(a * a, axis=-1, keepdims=True))    # (tm, 1)
    # a / max(norms/eps, 1) == a * min(eps/norms, 1)  (norms==0 -> scale 1).
    inv_scale = jnp.minimum(epsilon / norms, 1.0)               # one div per row
    out_ref[...] = (a * inv_scale).astype(out_ref.dtype)


def clip_attack(attack, epsilon, *, tile_rows=1024):
    B, S, D = attack.shape
    N = B * S
    tm = _round_up(tile_rows, _sublane_multiple(attack.dtype))
    flat = attack.reshape(N, D)
    out = pl.pallas_call(
        functools.partial(_clip_kernel, float(epsilon)),
        out_shape=jax.ShapeDtypeStruct((N, D), attack.dtype),
        grid_spec=pltpu.PrefetchScalarGridSpec(
            num_scalar_prefetch=0,
            grid=(pl.cdiv(N, tm),),                              # partial last tile OK
            in_specs=[pl.BlockSpec((tm, D), lambda i: (i, 0))],
            out_specs=pl.BlockSpec((tm, D), lambda i: (i, 0)),
        ),
        compiler_params=pltpu.CompilerParams(
            dimension_semantics=("parallel",),
            vmem_limit_bytes=64 * 1024 * 1024),
        input_output_aliases={0: 0},                             # overwrite in place
    )(flat)
    return out.reshape(B, S, D)


# ----------------------------------------------------------------------------
# forward: fused (mask * attack) @ inv_proj matmul + residual add.
# ----------------------------------------------------------------------------
def _forward_kernel(x_ref, attack_ref, invproj_ref, mask_ref, out_ref, *,
                    mxu_dtype):
    inv_proj = invproj_ref[...]
    # Fold the {0,1} mask into the matmul LHS: x + (m * attack) @ inv_proj is
    # mathematically identical to the masked residual add, and the dtype cast
    # happens here (VPU, free) instead of as an extra XLA pass over HBM.
    a = attack_ref[...].astype(jnp.float32) * mask_ref[...]      # (tm, D)
    if mxu_dtype is not None:
        a = a.astype(mxu_dtype)
        inv_proj = inv_proj.astype(mxu_dtype)
    else:
        a = a.astype(inv_proj.dtype)
    unproj = jnp.dot(a, inv_proj, preferred_element_type=jnp.float32)
    out_ref[...] = (x_ref[...].astype(jnp.float32) + unproj).astype(out_ref.dtype)


def whitened_gd_adversary_forward(x, attack, inv_proj, attack_mask,
                                  *, tile_rows=1024, mxu_dtype=None):
    """x: (B, S, D); attack: (B, S, D); inv_proj: (D, D);
    attack_mask: (B, S_mask >= S) bool.
    mxu_dtype: optionally cast matmul operands (e.g. jnp.bfloat16) in-kernel;
    accumulation stays f32."""
    B, S, D = x.shape
    assert attack.shape == (B, S, D), "attack must match x's (B, S, D)"
    assert inv_proj.shape == (D, D), "inv_proj must be (D, D)"
    assert attack_mask.shape[0] == B and attack_mask.shape[1] >= S, \
        "attack_mask must cover x's batch and sequence"

    mask = attack_mask[:, :S]                                    # mask[:, :x.shape[1]]
    N = B * S
    tm = _round_up(tile_rows,
                   _sublane_multiple(x.dtype, attack.dtype, inv_proj.dtype))

    x_flat = x.reshape(N, D)
    a_flat = attack.reshape(N, D)                # cast happens inside the kernel
    m_flat = mask.reshape(N, 1).astype(jnp.float32)

    # TODO(synk): for very large D (>= 2048) tile inv_proj's column dim with a
    # second grid axis (lane-dense (tm, tn) outputs) to stay inside v7x's
    # 64 MiB VMEM; at D <= 1024 the resident (D, D) block is cheap.
    out = pl.pallas_call(
        functools.partial(_forward_kernel, mxu_dtype=mxu_dtype),
        out_shape=jax.ShapeDtypeStruct((N, D), x.dtype),
        grid_spec=pltpu.PrefetchScalarGridSpec(
            num_scalar_prefetch=0,
            grid=(pl.cdiv(N, tm),),                              # partial last tile OK
            in_specs=[
                pl.BlockSpec((tm, D), lambda i: (i, 0)),         # x
                pl.BlockSpec((tm, D), lambda i: (i, 0)),         # attack
                pl.BlockSpec((D, D), lambda i: (0, 0)),          # inv_proj (resident)
                pl.BlockSpec((tm, 1), lambda i: (i, 0)),         # mask
            ],
            out_specs=pl.BlockSpec((tm, D), lambda i: (i, 0)),
        ),
        compiler_params=pltpu.CompilerParams(
            dimension_semantics=("parallel",),
            vmem_limit_bytes=64 * 1024 * 1024),
    )(x_flat, a_flat, inv_proj, m_flat)
    return out.reshape(B, S, D)


# ----------------------------------------------------------------------------
# Deterministic "module" construction + run.
# ----------------------------------------------------------------------------
if __name__ == "__main__":
    # N = B*S = 300: not a multiple of the row tile, exercises the pl.cdiv path.
    batch, seq, dim = 3, 100, 128
    epsilon = 0.5

    key = jax.random.PRNGKey(0)
    k_proj, k_attack, k_x, k_mask = jax.random.split(key, 4)

    # proj: well-conditioned invertible matrix; inv_proj = proj^{-1} (host glue,
    # matches torch.inverse(proj) in __init__).
    proj = (jax.random.normal(k_proj, (dim, dim), dtype=jnp.float32) * 0.05
            + jnp.eye(dim, dtype=jnp.float32))
    inv_proj = jnp.linalg.inv(proj)

    # nn.Parameter(torch.randn(mask_B, mask_S, dim)) -> clipped to ||.|| <= eps
    attack_raw = jax.random.normal(k_attack, (batch, seq, dim),
                                   dtype=jnp.float32)

    # Pure-JAX clip reference computed BEFORE the (in-place-aliased) kernel runs.
    norms_raw = jnp.linalg.norm(attack_raw, axis=-1, keepdims=True)
    clip_ref = attack_raw / jnp.maximum(norms_raw / epsilon, 1.0)
    clip_ref = jax.block_until_ready(clip_ref)

    attack = clip_attack(attack_raw, epsilon)

    attack_mask = jax.random.bernoulli(k_mask, 0.5, (batch, seq))
    x = jax.random.normal(k_x, (batch, seq, dim), dtype=jnp.float32)

    out = whitened_gd_adversary_forward(x, attack, inv_proj, attack_mask)
    out = jax.block_until_ready(out)

    # Pure-JAX reference check of the forward semantics.
    unproj_ref = jnp.einsum('nd,bsn->bsd', inv_proj, attack)
    ref = jnp.where(attack_mask[:, :, None], x + unproj_ref.astype(x.dtype), x)
    assert jnp.allclose(out, ref, atol=1e-4, rtol=1e-4), "mismatch vs reference"

    # Pure-JAX reference check of the clip kernel.
    assert jnp.allclose(attack, clip_ref, atol=1e-5, rtol=1e-5), "clip mismatch"

    # Sanity: clipped attack norms <= epsilon (+ tolerance).
    norms = jnp.linalg.norm(attack, axis=-1)
    assert bool(jnp.all(norms <= epsilon + 1e-4)), "clip failed"

    print("KERNEL_OK")
</pallas_src>

<mosaic_0001>
module attributes {stable_mosaic.version = 11 : i64} {
  func.func @_clip_kernel(%arg0: i32, %arg1: memref<1024x128xf32, #tpu.memory_space<vmem>>, %arg2: memref<1024x128xf32, #tpu.memory_space<vmem>>) attributes {dimension_semantics = [#tpu.dimension_semantics<parallel>], iteration_bounds = array<i64: 1>, scalar_prefetch = 0 : i64, scratch_operands = 0 : i64, tpu.core_type = #tpu.core_type<tc>, window_params = [{transform_indices = @transform_0, window_bounds = array<i64: 1024, 128>}, {transform_indices = @transform_1, window_bounds = array<i64: 1024, 128>}]} {
    %c0 = arith.constant 0 : index
    %c0_0 = arith.constant 0 : index
    %0 = vector.load %arg1[%c0, %c0_0] : memref<1024x128xf32, #tpu.memory_space<vmem>>, vector<1024x128xf32>
    %1 = arith.mulf %0, %0 : vector<1024x128xf32>
    %cst = arith.constant dense<0.000000e+00> : vector<1024xf32>
    %2 = vector.multi_reduction <add>, %1, %cst [1] : vector<1024x128xf32> to vector<1024xf32>
    %3 = vector.shape_cast %2 : vector<1024xf32> to vector<1024x1xf32>
    %4 = math.sqrt %3 : vector<1024x1xf32>
    %cst_1 = arith.constant 5.000000e-01 : f32
    %5 = vector.broadcast %cst_1 : f32 to vector<1024x1xf32>
    %6 = arith.divf %5, %4 : vector<1024x1xf32>
    %cst_2 = arith.constant 1.000000e+00 : f32
    %7 = vector.broadcast %cst_2 : f32 to vector<1024x1xf32>
    %8 = arith.minimumf %6, %7 : vector<1024x1xf32>
    %9 = vector.broadcast %8 : vector<1024x1xf32> to vector<1024x128xf32>
    %10 = arith.mulf %0, %9 : vector<1024x128xf32>
    %c0_3 = arith.constant 0 : index
    %c0_4 = arith.constant 0 : index
    %11 = vector.load %arg2[%c0_3, %c0_4] : memref<1024x128xf32, #tpu.memory_space<vmem>>, vector<1024x128xf32>
    tpu.vector_store %arg2[%c0_3, %c0_4], %10 {strides = array<i32>} : memref<1024x128xf32, #tpu.memory_space<vmem>>, vector<1024x128xf32>,
    return
  }
  func.func @transform_0(%arg0: i32) -> (i32, i32) {
    %c0_i32 = arith.constant 0 : i32
    %c0_i32_0 = arith.constant 0 : i32
    return %arg0, %c0_i32 : i32, i32
  }
  func.func @transform_1(%arg0: i32) -> (i32, i32) {
    %c0_i32 = arith.constant 0 : i32
    %c0_i32_0 = arith.constant 0 : i32
    return %arg0, %c0_i32 : i32, i32
  }
}

</mosaic_0001>

<llo_original>
// kernel: tpu_custom_call.1
$region0: #{tpu_custom_call.1}
  #allocation0 [shape = 'u32[]', space=smem, size = 0x4, offset = 0x4, fixed_abs, tag = 'smem constant byte address 0x4 - core index']
  #allocation1 [shape = 'u32[144,128]{1,0:T(1,128)}', space=vmem, size = 0x12000, scoped, tag = 'internal scratch']
  %s0 = inlined_call_operand.hbm [shape: f32[300,128], index: 0, kind: input, shape index: {}, may-alias: {0,1}]
  %s1 = inlined_call_operand.hbm [shape: f32[300,128], index: 1, kind: output, shape index: {}, may-alias: {0,1}]
  %s2 = sld [smem:[#allocation0]]
  $region18: #{tpu_custom_call.1} parent=0
    _
  %s4 = ssub.s32 1, %s2
  %s5 = scalar_select 0, %s4, %s2
  $region1: #{tpu_custom_call.1} parent=0
    #allocation2 [shape = 'u8[524288]{0}', space=vmem, size = 0x80000, scoped, tag = 'input window, operand 0, single buffered']
    #allocation3 [shape = 's32[1]{0}', space=sflag, size = 0x4, scoped, tag = 'scoped memory for tpu_custom_call.1']
    #allocation4 [shape = 's32[1]{0}', space=sflag, size = 0x4, scoped, tag = 'scoped memory for tpu_custom_call.1']
    #allocation5 [shape = 'u8[524288]{0}', space=vmem, size = 0x80000, scoped, tag = 'output window, operand 0, single buffered']
    %6 = vsyncpa [#allocation3], 0
    %7 = vsyncpa [#allocation4], 0
    // Predicated region
    $region2: #{tpu_custom_call.1} parent=1 // pred_check
      _
    $region3: #{tpu_custom_call.1} parent=1 // pred_check_branch
      %9 = sbr.rel (0) target = $region5
    $region4: #{tpu_custom_call.1} parent=1 // pred_region
      %s11 = ssub.s32 16384, 4864
      %12 = vsyncadd [#allocation3], %s11
      %s13 = sshll.u32 [#allocation2], 4
      %s14 = int_to_ptr.vmem [resolvable:$true] %s13
      %19 = dma.hbm_to_vmem [thread:$0]  %s0, 4864, %s14, [#allocation3], 128, 128, 8
    $region5: #{tpu_custom_call.1} parent=1 // pred_fallthru
      _
    // Predicated region
    $region6: #{tpu_custom_call.1} parent=1 // pred_check
      _
    $region7: #{tpu_custom_call.1} parent=1 // pred_check_branch
      %21 = sbr.rel (0) target = $region9
    $region8: #{tpu_custom_call.1} parent=1 // pred_region
      %22 = dma.done [#allocation3], 16384
    $region9: #{tpu_custom_call.1} parent=1 // pred_fallthru
      _
    %v23 = vld [vmem:[#allocation2] sm:$0xff]
    %v24 = vld [vmem:[#allocation2 + $0x8] sm:$0xff]
    %v25 = vld [vmem:[#allocation2 + $0x10] sm:$0xff]
    %v26 = vld [vmem:[#allocation2 + $0x18] sm:$0xff]
    %v27 = vld [vmem:[#allocation2 + $0x20] sm:$0xff]
    %v28 = vld [vmem:[#allocation2 + $0x28] sm:$0xff]
    %v29 = vld [vmem:[#allocation2 + $0x30] sm:$0xff]
    %v30 = vld [vmem:[#allocation2 + $0x38] sm:$0xff]
    %v31 = vld [vmem:[#allocation2 + $0x40] sm:$0xff]
    %v32 = vld [vmem:[#allocation2 + $0x48] sm:$0xff]
    %v33 = vld [vmem:[#allocation2 + $0x50] sm:$0xff]
    %v34 = vld [vmem:[#allocation2 + $0x58] sm:$0xff]
    %v35 = vld [vmem:[#allocation2 + $0x60] sm:$0xff]
    %v36 = vld [vmem:[#allocation2 + $0x68] sm:$0xff]
    %v37 = vld [vmem:[#allocation2 + $0x70] sm:$0xff]
    %v38 = vld [vmem:[#allocation2 + $0x78] sm:$0xff]
    %v39 = vld [vmem:[#allocation2 + $0x80] sm:$0xff]
    %v40 = vld [vmem:[#allocation2 + $0x88] sm:$0xff]
    %v41 = vld [vmem:[#allocation2 + $0x90] sm:$0xff]
    %v42 = vld [vmem:[#allocation2 + $0x98] sm:$0xff]
    %v43 = vld [vmem:[#allocation2 + $0xa0] sm:$0xff]
    %v44 = vld [vmem:[#allocation2 + $0xa8] sm:$0xff]
    %v45 = vld [vmem:[#allocation2 + $0xb0] sm:$0xff]
    %v46 = vld [vmem:[#allocation2 + $0xb8] sm:$0xff]
    %v47 = vld [vmem:[#allocation2 + $0xc0] sm:$0xff]
    %v48 = vld [vmem:[#allocation2 + $0xc8] sm:$0xff]
    %v49 = vld [vmem:[#allocation2 + $0xd0] sm:$0xff]
    %v50 = vld [vmem:[#allocation2 + $0xd8] sm:$0xff]
    %v51 = vld [vmem:[#allocation2 + $0xe0] sm:$0xff]
    %v52 = vld [vmem:[#allocation2 + $0xe8] sm:$0xff]
    %v53 = vld [vmem:[#allocation2 + $0xf0] sm:$0xff]
    %v54 = vld [vmem:[#allocation2 + $0xf8] sm:$0xff]
    %v55 = vld [vmem:[#allocation2 + $0x100] sm:$0xff]
    %v56 = vld [vmem:[#allocation2 + $0x108] sm:$0xff]
    %v57 = vld [vmem:[#allocation2 + $0x110] sm:$0xff]
    %v58 = vld [vmem:[#allocation2 + $0x118] sm:$0xff]
    %v59 = vld [vmem:[#allocation2 + $0x120] sm:$0xff]
    %v60 = vld [vmem:[#allocation2 + $0x128] sm:$0xff]
    %v61 = vld [vmem:[#allocation2 + $0x130] sm:$0xff]
    %v62 = vld [vmem:[#allocation2 + $0x138] sm:$0xff]
    %v63 = vld [vmem:[#allocation2 + $0x140] sm:$0xff]
    %v64 = vld [vmem:[#allocation2 + $0x148] sm:$0xff]
    %v65 = vld [vmem:[#allocation2 + $0x150] sm:$0xff]
    %v66 = vld [vmem:[#allocation2 + $0x158] sm:$0xff]
    %v67 = vld [vmem:[#allocation2 + $0x160] sm:$0xff]
    %v68 = vld [vmem:[#allocation2 + $0x168] sm:$0xff]
    %v69 = vld [vmem:[#allocation2 + $0x170] sm:$0xff]
    %v70 = vld [vmem:[#allocation2 + $0x178] sm:$0xff]
    %v71 = vld [vmem:[#allocation2 + $0x180] sm:$0xff]
    %v72 = vld [vmem:[#allocation2 + $0x188] sm:$0xff]
    %v73 = vld [vmem:[#allocation2 + $0x190] sm:$0xff]
    %v74 = vld [vmem:[#allocation2 + $0x198] sm:$0xff]
    %v75 = vld [vmem:[#allocation2 + $0x1a0] sm:$0xff]
    %v76 = vld [vmem:[#allocation2 + $0x1a8] sm:$0xff]
    %v77 = vld [vmem:[#allocation2 + $0x1b0] sm:$0xff]
    %v78 = vld [vmem:[#allocation2 + $0x1b8] sm:$0xff]
    %v79 = vld [vmem:[#allocation2 + $0x1c0] sm:$0xff]
    %v80 = vld [vmem:[#allocation2 + $0x1c8] sm:$0xff]
    %v81 = vld [vmem:[#allocation2 + $0x1d0] sm:$0xff]
    %v82 = vld [vmem:[#allocation2 + $0x1d8] sm:$0xff]
    %v83 = vld [vmem:[#allocation2 + $0x1e0] sm:$0xff]
    %v84 = vld [vmem:[#allocation2 + $0x1e8] sm:$0xff]
    %v85 = vld [vmem:[#allocation2 + $0x1f0] sm:$0xff]
    %v86 = vld [vmem:[#allocation2 + $0x1f8] sm:$0xff]
    %v87 = vld [vmem:[#allocation2 + $0x200] sm:$0xff]
    %v88 = vld [vmem:[#allocation2 + $0x208] sm:$0xff]
    %v89 = vld [vmem:[#allocation2 + $0x210] sm:$0xff]
    %v90 = vld [vmem:[#allocation2 + $0x218] sm:$0xff]
    %v91 = vld [vmem:[#allocation2 + $0x220] sm:$0xff]
    %v92 = vld [vmem:[#allocation2 + $0x228] sm:$0xff]
    %v93 = vld [vmem:[#allocation2 + $0x230] sm:$0xff]
    %v94 = vld [vmem:[#allocation2 + $0x238] sm:$0xff]
    %v95 = vld [vmem:[#allocation2 + $0x240] sm:$0xff]
    %v96 = vld [vmem:[#allocation2 + $0x248] sm:$0xff]
    %v97 = vld [vmem:[#allocation2 + $0x250] sm:$0xff]
    %v98 = vld [vmem:[#allocation2 + $0x258] sm:$0xff]
    %v99 = vld [vmem:[#allocation2 + $0x260] sm:$0xff]
    %v100 = vld [vmem:[#allocation2 + $0x268] sm:$0xff]
    %v101 = vld [vmem:[#allocation2 + $0x270] sm:$0xff]
    %v102 = vld [vmem:[#allocation2 + $0x278] sm:$0xff]
    %v103 = vld [vmem:[#allocation2 + $0x280] sm:$0xff]
    %v104 = vld [vmem:[#allocation2 + $0x288] sm:$0xff]
    %v105 = vld [vmem:[#allocation2 + $0x290] sm:$0xff]
    %v106 = vld [vmem:[#allocation2 + $0x298] sm:$0xff]
    %v107 = vld [vmem:[#allocation2 + $0x2a0] sm:$0xff]
    %v108 = vld [vmem:[#allocation2 + $0x2a8] sm:$0xff]
    %v109 = vld [vmem:[#allocation2 + $0x2b0] sm:$0xff]
    %v110 = vld [vmem:[#allocation2 + $0x2b8] sm:$0xff]
    %v111 = vld [vmem:[#allocation2 + $0x2c0] sm:$0xff]
    %v112 = vld [vmem:[#allocation2 + $0x2c8] sm:$0xff]
    %v113 = vld [vmem:[#allocation2 + $0x2d0] sm:$0xff]
    %v114 = vld [vmem:[#allocation2 + $0x2d8] sm:$0xff]
    %v115 = vld [vmem:[#allocation2 + $0x2e0] sm:$0xff]
    %v116 = vld [vmem:[#allocation2 + $0x2e8] sm:$0xff]
    %v117 = vld [vmem:[#allocation2 + $0x2f0] sm:$0xff]
    %v118 = vld [vmem:[#allocation2 + $0x2f8] sm:$0xff]
    %v119 = vld [vmem:[#allocation2 + $0x300] sm:$0xff]
    %v120 = vld [vmem:[#allocation2 + $0x308] sm:$0xff]
    %v121 = vld [vmem:[#allocation2 + $0x310] sm:$0xff]
    %v122 = vld [vmem:[#allocation2 + $0x318] sm:$0xff]
    %v123 = vld [vmem:[#allocation2 + $0x320] sm:$0xff]
    %v124 = vld [vmem:[#allocation2 + $0x328] sm:$0xff]
    %v125 = vld [vmem:[#allocation2 + $0x330] sm:$0xff]
    %v126 = vld [vmem:[#allocation2 + $0x338] sm:$0xff]
    %v127 = vld [vmem:[#allocation2 + $0x340] sm:$0xff]
    %v128 = vld [vmem:[#allocation2 + $0x348] sm:$0xff]
    %v129 = vld [vmem:[#allocation2 + $0x350] sm:$0xff]
    %v130 = vld [vmem:[#allocation2 + $0x358] sm:$0xff]
    %v131 = vld [vmem:[#allocation2 + $0x360] sm:$0xff]
    %v132 = vld [vmem:[#allocation2 + $0x368] sm:$0xff]
    %v133 = vld [vmem:[#allocation2 + $0x370] sm:$0xff]
    %v134 = vld [vmem:[#allocation2 + $0x378] sm:$0xff]
    %v135 = vld [vmem:[#allocation2 + $0x380] sm:$0xff]
    %v136 = vld [vmem:[#allocation2 + $0x388] sm:$0xff]
    %v137 = vld [vmem:[#allocation2 + $0x390] sm:$0xff]
    %v138 = vld [vmem:[#allocation2 + $0x398] sm:$0xff]
    %v139 = vld [vmem:[#allocation2 + $0x3a0] sm:$0xff]
    %v140 = vld [vmem:[#allocation2 + $0x3a8] sm:$0xff]
    %v141 = vld [vmem:[#allocation2 + $0x3b0] sm:$0xff]
    %v142 = vld [vmem:[#allocation2 + $0x3b8] sm:$0xff]
    %v143 = vld [vmem:[#allocation2 + $0x3c0] sm:$0xff]
    %v144 = vld [vmem:[#allocation2 + $0x3c8] sm:$0xff]
    %v145 = vld [vmem:[#allocation2 + $0x3d0] sm:$0xff]
    %v146 = vld [vmem:[#allocation2 + $0x3d8] sm:$0xff]
    %v147 = vld [vmem:[#allocation2 + $0x3e0] sm:$0xff]
    %v148 = vld [vmem:[#allocation2 + $0x3e8] sm:$0xff]
    %v149 = vld [vmem:[#allocation2 + $0x3f0] sm:$0xff]
    %v150 = vld [vmem:[#allocation2 + $0x3f8] sm:$0xff]
    %v151 = vmul.f32 %v23, %v23
    %v152 = vmul.f32 %v24, %v24
    %v153 = vmul.f32 %v25, %v25
    %v154 = vmul.f32 %v26, %v26
    %v155 = vmul.f32 %v27, %v27
    %v156 = vmul.f32 %v28, %v28
    %v157 = vmul.f32 %v29, %v29
    %v158 = vmul.f32 %v30, %v30
    %v159 = vmul.f32 %v31, %v31
    %v160 = vmul.f32 %v32, %v32
    %v161 = vmul.f32 %v33, %v33
    %v162 = vmul.f32 %v34, %v34
    %v163 = vmul.f32 %v35, %v35
    %v164 = vmul.f32 %v36, %v36
    %v165 = vmul.f32 %v37, %v37
    %v166 = vmul.f32 %v38, %v38
    %v167 = vmul.f32 %v39, %v39
    %v168 = vmul.f32 %v40, %v40
    %v169 = vmul.f32 %v41, %v41
    %v170 = vmul.f32 %v42, %v42
    %v171 = vmul.f32 %v43, %v43
    %v172 = vmul.f32 %v44, %v44
    %v173 = vmul.f32 %v45, %v45
    %v174 = vmul.f32 %v46, %v46
    %v175 = vmul.f32 %v47, %v47
    %v176 = vmul.f32 %v48, %v48
    %v177 = vmul.f32 %v49, %v49
    %v178 = vmul.f32 %v50, %v50
    %v179 = vmul.f32 %v51, %v51
    %v180 = vmul.f32 %v52, %v52
    %v181 = vmul.f32 %v53, %v53
    %v182 = vmul.f32 %v54, %v54
    %v183 = vmul.f32 %v55, %v55
    %v184 = vmul.f32 %v56, %v56
    %v185 = vmul.f32 %v57, %v57
    %v186 = vmul.f32 %v58, %v58
    %v187 = vmul.f32 %v59, %v59
    %v188 = vmul.f32 %v60, %v60
    %v189 = vmul.f32 %v61, %v61
    %v190 = vmul.f32 %v62, %v62
    %v191 = vmul.f32 %v63, %v63
    %v192 = vmul.f32 %v64, %v64
    %v193 = vmul.f32 %v65, %v65
    %v194 = vmul.f32 %v66, %v66
    %v195 = vmul.f32 %v67, %v67
    %v196 = vmul.f32 %v68, %v68
    %v197 = vmul.f32 %v69, %v69
    %v198 = vmul.f32 %v70, %v70
    %v199 = vmul.f32 %v71, %v71
    %v200 = vmul.f32 %v72, %v72
    %v201 = vmul.f32 %v73, %v73
    %v202 = vmul.f32 %v74, %v74
    %v203 = vmul.f32 %v75, %v75
    %v204 = vmul.f32 %v76, %v76
    %v205 = vmul.f32 %v77, %v77
    %v206 = vmul.f32 %v78, %v78
    %v207 = vmul.f32 %v79, %v79
    %v208 = vmul.f32 %v80, %v80
    %v209 = vmul.f32 %v81, %v81
    %v210 = vmul.f32 %v82, %v82
    %v211 = vmul.f32 %v83, %v83
    %v212 = vmul.f32 %v84, %v84
    %v213 = vmul.f32 %v85, %v85
    %v214 = vmul.f32 %v86, %v86
    %v215 = vmul.f32 %v87, %v87
    %v216 = vmul.f32 %v88, %v88
    %v217 = vmul.f32 %v89, %v89
    %v218 = vmul.f32 %v90, %v90
    %v219 = vmul.f32 %v91, %v91
    %v220 = vmul.f32 %v92, %v92
    %v221 = vmul.f32 %v93, %v93
    %v222 = vmul.f32 %v94, %v94
    %v223 = vmul.f32 %v95, %v95
    %v224 = vmul.f32 %v96, %v96
    %v225 = vmul.f32 %v97, %v97
    %v226 = vmul.f32 %v98, %v98
    %v227 = vmul.f32 %v99, %v99
    %v228 = vmul.f32 %v100, %v100
    %v229 = vmul.f32 %v101, %v101
    %v230 = vmul.f32 %v102, %v102
    %v231 = vmul.f32 %v103, %v103
    %v232 = vmul.f32 %v104, %v104
    %v233 = vmul.f32 %v105, %v105
    %v234 = vmul.f32 %v106, %v106
    %v235 = vmul.f32 %v107, %v107
    %v236 = vmul.f32 %v108, %v108
    %v237 = vmul.f32 %v109, %v109
    %v238 = vmul.f32 %v110, %v110
    %v239 = vmul.f32 %v111, %v111
    %v240 = vmul.f32 %v112, %v112
    %v241 = vmul.f32 %v113, %v113
    %v242 = vmul.f32 %v114, %v114
    %v243 = vmul.f32 %v115, %v115
    %v244 = vmul.f32 %v116, %v116
    %v245 = vmul.f32 %v117, %v117
    %v246 = vmul.f32 %v118, %v118
    %v247 = vmul.f32 %v119, %v119
    %v248 = vmul.f32 %v120, %v120
    %v249 = vmul.f32 %v121, %v121
    %v250 = vmul.f32 %v122, %v122
    %v251 = vmul.f32 %v123, %v123
    %v252 = vmul.f32 %v124, %v124
    %v253 = vmul.f32 %v125, %v125
    %v254 = vmul.f32 %v126, %v126
    %v255 = vmul.f32 %v127, %v127
    %v256 = vmul.f32 %v128, %v128
    %v257 = vmul.f32 %v129, %v129
    %v258 = vmul.f32 %v130, %v130
    %v259 = vmul.f32 %v131, %v131
    %v260 = vmul.f32 %v132, %v132
    %v261 = vmul.f32 %v133, %v133
    %v262 = vmul.f32 %v134, %v134
    %v263 = vmul.f32 %v135, %v135
    %v264 = vmul.f32 %v136, %v136
    %v265 = vmul.f32 %v137, %v137
    %v266 = vmul.f32 %v138, %v138
    %v267 = vmul.f32 %v139, %v139
    %v268 = vmul.f32 %v140, %v140
    %v269 = vmul.f32 %v141, %v141
    %v270 = vmul.f32 %v142, %v142
    %v271 = vmul.f32 %v143, %v143
    %v272 = vmul.f32 %v144, %v144
    %v273 = vmul.f32 %v145, %v145
    %v274 = vmul.f32 %v146, %v146
    %v275 = vmul.f32 %v147, %v147
    %v276 = vmul.f32 %v148, %v148
    %v277 = vmul.f32 %v149, %v149
    %v278 = vmul.f32 %v150, %v150
    %279 = vadd.xlane.f32.xlu0 %v151
    %v280 = vpop.xlane.xlu0 %279
    %281 = vadd.xlane.f32.xlu0 %v152
    %v282 = vpop.xlane.xlu0 %281
    %283 = vadd.xlane.f32.xlu0 %v153
    %v284 = vpop.xlane.xlu0 %283
    %285 = vadd.xlane.f32.xlu0 %v154
    %v286 = vpop.xlane.xlu0 %285
    %287 = vadd.xlane.f32.xlu0 %v155
    %v288 = vpop.xlane.xlu0 %287
    %289 = vadd.xlane.f32.xlu0 %v156
    %v290 = vpop.xlane.xlu0 %289
    %291 = vadd.xlane.f32.xlu0 %v157
    %v292 = vpop.xlane.xlu0 %291
    %293 = vadd.xlane.f32.xlu0 %v158
    %v294 = vpop.xlane.xlu0 %293
    %295 = vadd.xlane.f32.xlu0 %v159
    %v296 = vpop.xlane.xlu0 %295
    %297 = vadd.xlane.f32.xlu0 %v160
    %v298 = vpop.xlane.xlu0 %297
    %299 = vadd.xlane.f32.xlu0 %v161
    %v300 = vpop.xlane.xlu0 %299
    %301 = vadd.xlane.f32.xlu0 %v162
    %v302 = vpop.xlane.xlu0 %301
    %303 = vadd.xlane.f32.xlu0 %v163
    %v304 = vpop.xlane.xlu0 %303
    %305 = vadd.xlane.f32.xlu0 %v164
    %v306 = vpop.xlane.xlu0 %305
    %307 = vadd.xlane.f32.xlu0 %v165
    %v308 = vpop.xlane.xlu0 %307
    %309 = vadd.xlane.f32.xlu0 %v166
    %v310 = vpop.xlane.xlu0 %309
    %311 = vadd.xlane.f32.xlu0 %v167
    %v312 = vpop.xlane.xlu0 %311
    %313 = vadd.xlane.f32.xlu0 %v168
    %v314 = vpop.xlane.xlu0 %313
    %315 = vadd.xlane.f32.xlu0 %v169
    %v316 = vpop.xlane.xlu0 %315
    %317 = vadd.xlane.f32.xlu0 %v170
    %v318 = vpop.xlane.xlu0 %317
    %319 = vadd.xlane.f32.xlu0 %v171
    %v320 = vpop.xlane.xlu0 %319
    %321 = vadd.xlane.f32.xlu0 %v172
    %v322 = vpop.xlane.xlu0 %321
    %323 = vadd.xlane.f32.xlu0 %v173
    %v324 = vpop.xlane.xlu0 %323
    %325 = vadd.xlane.f32.xlu0 %v174
    %v326 = vpop.xlane.xlu0 %325
    %327 = vadd.xlane.f32.xlu0 %v175
    %v328 = vpop.xlane.xlu0 %327
    %329 = vadd.xlane.f32.xlu0 %v176
    %v330 = vpop.xlane.xlu0 %329
    %331 = vadd.xlane.f32.xlu0 %v177
    %v332 = vpop.xlane.xlu0 %331
    %333 = vadd.xlane.f32.xlu0 %v178
    %v334 = vpop.xlane.xlu0 %333
    %335 = vadd.xlane.f32.xlu0 %v179
    %v336 = vpop.xlane.xlu0 %335
    %337 = vadd.xlane.f32.xlu0 %v180
    %v338 = vpop.xlane.xlu0 %337
    %339 = vadd.xlane.f32.xlu0 %v181
    %v340 = vpop.xlane.xlu0 %339
    %341 = vadd.xlane.f32.xlu0 %v182
    %v342 = vpop.xlane.xlu0 %341
    %343 = vadd.xlane.f32.xlu0 %v183
    %v344 = vpop.xlane.xlu0 %343
    %345 = vadd.xlane.f32.xlu0 %v184
    %v346 = vpop.xlane.xlu0 %345
    %347 = vadd.xlane.f32.xlu0 %v185
    %v348 = vpop.xlane.xlu0 %347
    %349 = vadd.xlane.f32.xlu0 %v186
    %v350 = vpop.xlane.xlu0 %349
    %351 = vadd.xlane.f32.xlu0 %v187
    %v352 = vpop.xlane.xlu0 %351
    %353 = vadd.xlane.f32.xlu0 %v188
    %v354 = vpop.xlane.xlu0 %353
    %355 = vadd.xlane.f32.xlu0 %v189
    %v356 = vpop.xlane.xlu0 %355
    %357 = vadd.xlane.f32.xlu0 %v190
    %v358 = vpop.xlane.xlu0 %357
    %359 = vadd.xlane.f32.xlu0 %v191
    %v360 = vpop.xlane.xlu0 %359
    %361 = vadd.xlane.f32.xlu0 %v192
    %v362 = vpop.xlane.xlu0 %361
    %363 = vadd.xlane.f32.xlu0 %v193
    %v364 = vpop.xlane.xlu0 %363
    %365 = vadd.xlane.f32.xlu0 %v194
    %v366 = vpop.xlane.xlu0 %365
    %367 = vadd.xlane.f32.xlu0 %v195
    %v368 = vpop.xlane.xlu0 %367
    %369 = vadd.xlane.f32.xlu0 %v196
    %v370 = vpop.xlane.xlu0 %369
    %371 = vadd.xlane.f32.xlu0 %v197
    %v372 = vpop.xlane.xlu0 %371
    %373 = vadd.xlane.f32.xlu0 %v198
    %v374 = vpop.xlane.xlu0 %373
    %375 = vadd.xlane.f32.xlu0 %v199
    %v376 = vpop.xlane.xlu0 %375
    %377 = vadd.xlane.f32.xlu0 %v200
    %v378 = vpop.xlane.xlu0 %377
    %379 = vadd.xlane.f32.xlu0 %v201
    %v380 = vpop.xlane.xlu0 %379
    %381 = vadd.xlane.f32.xlu0 %v202
    %v382 = vpop.xlane.xlu0 %381
    %383 = vadd.xlane.f32.xlu0 %v203
    %v384 = vpop.xlane.xlu0 %383
    %385 = vadd.xlane.f32.xlu0 %v204
    %v386 = vpop.xlane.xlu0 %385
    %387 = vadd.xlane.f32.xlu0 %v205
    %v388 = vpop.xlane.xlu0 %387
    %389 = vadd.xlane.f32.xlu0 %v206
    %v390 = vpop.xlane.xlu0 %389
    %391 = vadd.xlane.f32.xlu0 %v207
    %v392 = vpop.xlane.xlu0 %391
    %393 = vadd.xlane.f32.xlu0 %v208
    %v394 = vpop.xlane.xlu0 %393
    %395 = vadd.xlane.f32.xlu0 %v209
    %v396 = vpop.xlane.xlu0 %395
    %397 = vadd.xlane.f32.xlu0 %v210
    %v398 = vpop.xlane.xlu0 %397
    %399 = vadd.xlane.f32.xlu0 %v211
    %v400 = vpop.xlane.xlu0 %399
    %401 = vadd.xlane.f32.xlu0 %v212
    %v402 = vpop.xlane.xlu0 %401
    %403 = vadd.xlane.f32.xlu0 %v213
    %v404 = vpop.xlane.xlu0 %403
    %405 = vadd.xlane.f32.xlu0 %v214
    %v406 = vpop.xlane.xlu0 %405
    %407 = vadd.xlane.f32.xlu0 %v215
    %v408 = vpop.xlane.xlu0 %407
    %409 = vadd.xlane.f32.xlu0 %v216
    %v410 = vpop.xlane.xlu0 %409
    %411 = vadd.xlane.f32.xlu0 %v217
    %v412 = vpop.xlane.xlu0 %411
    %413 = vadd.xlane.f32.xlu0 %v218
    %v414 = vpop.xlane.xlu0 %413
    %415 = vadd.xlane.f32.xlu0 %v219
    %v416 = vpop.xlane.xlu0 %415
    %417 = vadd.xlane.f32.xlu0 %v220
    %v418 = vpop.xlane.xlu0 %417
    %419 = vadd.xlane.f32.xlu0 %v221
    %v420 = vpop.xlane.xlu0 %419
    %421 = vadd.xlane.f32.xlu0 %v222
    %v422 = vpop.xlane.xlu0 %421
    %423 = vadd.xlane.f32.xlu0 %v223
    %v424 = vpop.xlane.xlu0 %423
    %425 = vadd.xlane.f32.xlu0 %v224
    %v426 = vpop.xlane.xlu0 %425
    %427 = vadd.xlane.f32.xlu0 %v225
    %v428 = vpop.xlane.xlu0 %427
    %429 = vadd.xlane.f32.xlu0 %v226
    %v430 = vpop.xlane.xlu0 %429
    %431 = vadd.xlane.f32.xlu0 %v227
    %v432 = vpop.xlane.xlu0 %431
    %433 = vadd.xlane.f32.xlu0 %v228
    %v434 = vpop.xlane.xlu0 %433
    %435 = vadd.xlane.f32.xlu0 %v229
    %v436 = vpop.xlane.xlu0 %435
    %437 = vadd.xlane.f32.xlu0 %v230
    %v438 = vpop.xlane.xlu0 %437
    %439 = vadd.xlane.f32.xlu0 %v231
    %v440 = vpop.xlane.xlu0 %439
    %441 = vadd.xlane.f32.xlu0 %v232
    %v442 = vpop.xlane.xlu0 %441
    %443 = vadd.xlane.f32.xlu0 %v233
    %v444 = vpop.xlane.xlu0 %443
    %445 = vadd.xlane.f32.xlu0 %v234
    %v446 = vpop.xlane.xlu0 %445
    %447 = vadd.xlane.f32.xlu0 %v235
    %v448 = vpop.xlane.xlu0 %447
    %449 = vadd.xlane.f32.xlu0 %v236
    %v450 = vpop.xlane.xlu0 %449
    %451 = vadd.xlane.f32.xlu0 %v237
    %v452 = vpop.xlane.xlu0 %451
    %453 = vadd.xlane.f32.xlu0 %v238
    %v454 = vpop.xlane.xlu0 %453
    %455 = vadd.xlane.f32.xlu0 %v239
    %v456 = vpop.xlane.xlu0 %455
    %457 = vadd.xlane.f32.xlu0 %v240
    %v458 = vpop.xlane.xlu0 %457
    %459 = vadd.xlane.f32.xlu0 %v241
    %v460 = vpop.xlane.xlu0 %459
    %461 = vadd.xlane.f32.xlu0 %v242
    %v462 = vpop.xlane.xlu0 %461
    %463 = vadd.xlane.f32.xlu0 %v243
    %v464 = vpop.xlane.xlu0 %463
    %465 = vadd.xlane.f32.xlu0 %v244
    %v466 = vpop.xlane.xlu0 %465
    %467 = vadd.xlane.f32.xlu0 %v245
    %v468 = vpop.xlane.xlu0 %467
    %469 = vadd.xlane.f32.xlu0 %v246
    %v470 = vpop.xlane.xlu0 %469
    %471 = vadd.xlane.f32.xlu0 %v247
    %v472 = vpop.xlane.xlu0 %471
    %473 = vadd.xlane.f32.xlu0 %v248
    %v474 = vpop.xlane.xlu0 %473
    %475 = vadd.xlane.f32.xlu0 %v249
    %v476 = vpop.xlane.xlu0 %475
    %477 = vadd.xlane.f32.xlu0 %v250
    %v478 = vpop.xlane.xlu0 %477
    %479 = vadd.xlane.f32.xlu0 %v251
    %v480 = vpop.xlane.xlu0 %479
    %481 = vadd.xlane.f32.xlu0 %v252
    %v482 = vpop.xlane.xlu0 %481
    %483 = vadd.xlane.f32.xlu0 %v253
    %v484 = vpop.xlane.xlu0 %483
    %485 = vadd.xlane.f32.xlu0 %v254
    %v486 = vpop.xlane.xlu0 %485
    %487 = vadd.xlane.f32.xlu0 %v255
    %v488 = vpop.xlane.xlu0 %487
    %489 = vadd.xlane.f32.xlu0 %v256
    %v490 = vpop.xlane.xlu0 %489
    %491 = vadd.xlane.f32.xlu0 %v257
    %v492 = vpop.xlane.xlu0 %491
    %493 = vadd.xlane.f32.xlu0 %v258
    %v494 = vpop.xlane.xlu0 %493
    %495 = vadd.xlane.f32.xlu0 %v259
    %v496 = vpop.xlane.xlu0 %495
    %497 = vadd.xlane.f32.xlu0 %v260
    %v498 = vpop.xlane.xlu0 %497
    %499 = vadd.xlane.f32.xlu0 %v261
    %v500 = vpop.xlane.xlu0 %499
    %501 = vadd.xlane.f32.xlu0 %v262
    %v502 = vpop.xlane.xlu0 %501
    %503 = vadd.xlane.f32.xlu0 %v263
    %v504 = vpop.xlane.xlu0 %503
    %505 = vadd.xlane.f32.xlu0 %v264
    %v506 = vpop.xlane.xlu0 %505
    %507 = vadd.xlane.f32.xlu0 %v265
    %v508 = vpop.xlane.xlu0 %507
    %509 = vadd.xlane.f32.xlu0 %v266
    %v510 = vpop.xlane.xlu0 %509
    %511 = vadd.xlane.f32.xlu0 %v267
    %v512 = vpop.xlane.xlu0 %511
    %513 = vadd.xlane.f32.xlu0 %v268
    %v514 = vpop.xlane.xlu0 %513
    %515 = vadd.xlane.f32.xlu0 %v269
    %v516 = vpop.xlane.xlu0 %515
    %517 = vadd.xlane.f32.xlu0 %v270
    %v518 = vpop.xlane.xlu0 %517
    %519 = vadd.xlane.f32.xlu0 %v271
    %v520 = vpop.xlane.xlu0 %519
    %521 = vadd.xlane.f32.xlu0 %v272
    %v522 = vpop.xlane.xlu0 %521
    %523 = vadd.xlane.f32.xlu0 %v273
    %v524 = vpop.xlane.xlu0 %523
    %525 = vadd.xlane.f32.xlu0 %v274
    %v526 = vpop.xlane.xlu0 %525
    %527 = vadd.xlane.f32.xlu0 %v275
    %v528 = vpop.xlane.xlu0 %527
    %529 = vadd.xlane.f32.xlu0 %v276
    %v530 = vpop.xlane.xlu0 %529
    %531 = vadd.xlane.f32.xlu0 %v277
    %v532 = vpop.xlane.xlu0 %531
    %533 = vadd.xlane.f32.xlu0 %v278
    %v534 = vpop.xlane.xlu0 %533
    %v535 = vrsqrt.pop %v280
    %v536 = vmul.f32 %v280, %v535
    %vm537 = vcmp.eq.f32.partialorder %v280, inf
    %v538 = vsel %vm537, %v280, %v536
    %vm539 = vcmp.eq.f32.partialorder %v280, 0.0
    %v540 = vand.u32 %v280, 2147483648
    %v541 = vsel %vm539, %v540, %v538
    %v542 = vrsqrt.pop %v282
    %v543 = vmul.f32 %v282, %v542
    %vm544 = vcmp.eq.f32.partialorder %v282, inf
    %v545 = vsel %vm544, %v282, %v543
    %vm546 = vcmp.eq.f32.partialorder %v282, 0.0
    %v547 = vand.u32 %v282, 2147483648
    %v548 = vsel %vm546, %v547, %v545
    %v549 = vrsqrt.pop %v284
    %v550 = vmul.f32 %v284, %v549
    %vm551 = vcmp.eq.f32.partialorder %v284, inf
    %v552 = vsel %vm551, %v284, %v550
    %vm553 = vcmp.eq.f32.partialorder %v284, 0.0
    %v554 = vand.u32 %v284, 2147483648
    %v555 = vsel %vm553, %v554, %v552
    %v556 = vrsqrt.pop %v286
    %v557 = vmul.f32 %v286, %v556
    %vm558 = vcmp.eq.f32.partialorder %v286, inf
    %v559 = vsel %vm558, %v286, %v557
    %vm560 = vcmp.eq.f32.partialorder %v286, 0.0
    %v561 = vand.u32 %v286, 2147483648
    %v562 = vsel %vm560, %v561, %v559
    %v563 = vrsqrt.pop %v288
    %v564 = vmul.f32 %v288, %v563
    %vm565 = vcmp.eq.f32.partialorder %v288, inf
    %v566 = vsel %vm565, %v288, %v564
    %vm567 = vcmp.eq.f32.partialorder %v288, 0.0
    %v568 = vand.u32 %v288, 2147483648
    %v569 = vsel %vm567, %v568, %v566
    %v570 = vrsqrt.pop %v290
    %v571 = vmul.f32 %v290, %v570
    %vm572 = vcmp.eq.f32.partialorder %v290, inf
    %v573 = vsel %vm572, %v290, %v571
    %vm574 = vcmp.eq.f32.partialorder %v290, 0.0
    %v575 = vand.u32 %v290, 2147483648
    %v576 = vsel %vm574, %v575, %v573
    %v577 = vrsqrt.pop %v292
    %v578 = vmul.f32 %v292, %v577
    %vm579 = vcmp.eq.f32.partialorder %v292, inf
    %v580 = vsel %vm579, %v292, %v578
    %vm581 = vcmp.eq.f32.partialorder %v292, 0.0
    %v582 = vand.u32 %v292, 2147483648
    %v583 = vsel %vm581, %v582, %v580
    %v584 = vrsqrt.pop %v294
    %v585 = vmul.f32 %v294, %v584
    %vm586 = vcmp.eq.f32.partialorder %v294, inf
    %v587 = vsel %vm586, %v294, %v585
    %vm588 = vcmp.eq.f32.partialorder %v294, 0.0
    %v589 = vand.u32 %v294, 2147483648
    %v590 = vsel %vm588, %v589, %v587
    %v591 = vrsqrt.pop %v296
    %v592 = vmul.f32 %v296, %v591
    %vm593 = vcmp.eq.f32.partialorder %v296, inf
    %v594 = vsel %vm593, %v296, %v592
    %vm595 = vcmp.eq.f32.partialorder %v296, 0.0
    %v596 = vand.u32 %v296, 2147483648
    %v597 = vsel %vm595, %v596, %v594
    %v598 = vrsqrt.pop %v298
    %v599 = vmul.f32 %v298, %v598
    %vm600 = vcmp.eq.f32.partialorder %v298, inf
    %v601 = vsel %vm600, %v298, %v599
    %vm602 = vcmp.eq.f32.partialorder %v298, 0.0
    %v603 = vand.u32 %v298, 2147483648
    %v604 = vsel %vm602, %v603, %v601
    %v605 = vrsqrt.pop %v300
    %v606 = vmul.f32 %v300, %v605
    %vm607 = vcmp.eq.f32.partialorder %v300, inf
    %v608 = vsel %vm607, %v300, %v606
    %vm609 = vcmp.eq.f32.partialorder %v300, 0.0
    %v610 = vand.u32 %v300, 2147483648
    %v611 = vsel %vm609, %v610, %v608
    %v612 = vrsqrt.pop %v302
    %v613 = vmul.f32 %v302, %v612
    %vm614 = vcmp.eq.f32.partialorder %v302, inf
    %v615 = vsel %vm614, %v302, %v613
    %vm616 = vcmp.eq.f32.partialorder %v302, 0.0
    %v617 = vand.u32 %v302, 2147483648
    %v618 = vsel %vm616, %v617, %v615
    %v619 = vrsqrt.pop %v304
    %v620 = vmul.f32 %v304, %v619
    %vm621 = vcmp.eq.f32.partialorder %v304, inf
    %v622 = vsel %vm621, %v304, %v620
    %vm623 = vcmp.eq.f32.partialorder %v304, 0.0
    %v624 = vand.u32 %v304, 2147483648
    %v625 = vsel %vm623, %v624, %v622
    %v626 = vrsqrt.pop %v306
    %v627 = vmul.f32 %v306, %v626
    %vm628 = vcmp.eq.f32.partialorder %v306, inf
    %v629 = vsel %vm628, %v306, %v627
    %vm630 = vcmp.eq.f32.partialorder %v306, 0.0
    %v631 = vand.u32 %v306, 2147483648
    %v632 = vsel %vm630, %v631, %v629
    %v633 = vrsqrt.pop %v308
    %v634 = vmul.f32 %v308, %v633
    %vm635 = vcmp.eq.f32.partialorder %v308, inf
    %v636 = vsel %vm635, %v308, %v634
    %vm637 = vcmp.eq.f32.partialorder %v308, 0.0
    %v638 = vand.u32 %v308, 2147483648
    %v639 = vsel %vm637, %v638, %v636
    %v640 = vrsqrt.pop %v310
    %v641 = vmul.f32 %v310, %v640
    %vm642 = vcmp.eq.f32.partialorder %v310, inf
    %v643 = vsel %vm642, %v310, %v641
    %vm644 = vcmp.eq.f32.partialorder %v310, 0.0
    %v645 = vand.u32 %v310, 2147483648
    %v646 = vsel %vm644, %v645, %v643
    %v647 = vrsqrt.pop %v312
    %v648 = vmul.f32 %v312, %v647
    %vm649 = vcmp.eq.f32.partialorder %v312, inf
    %v650 = vsel %vm649, %v312, %v648
    %vm651 = vcmp.eq.f32.partialorder %v312, 0.0
    %v652 = vand.u32 %v312, 2147483648
    %v653 = vsel %vm651, %v652, %v650
    %v654 = vrsqrt.pop %v314
    %v655 = vmul.f32 %v314, %v654
    %vm656 = vcmp.eq.f32.partialorder %v314, inf
    %v657 = vsel %vm656, %v314, %v655
    %vm658 = vcmp.eq.f32.partialorder %v314, 0.0
    %v659 = vand.u32 %v314, 2147483648
    %v660 = vsel %vm658, %v659, %v657
    %v661 = vrsqrt.pop %v316
    %v662 = vmul.f32 %v316, %v661
    %vm663 = vcmp.eq.f32.partialorder %v316, inf
    %v664 = vsel %vm663, %v316, %v662
    %vm665 = vcmp.eq.f32.partialorder %v316, 0.0
    %v666 = vand.u32 %v316, 2147483648
    %v667 = vsel %vm665, %v666, %v664
    %v668 = vrsqrt.pop %v318
    %v669 = vmul.f32 %v318, %v668
    %vm670 = vcmp.eq.f32.partialorder %v318, inf
    %v671 = vsel %vm670, %v318, %v669
    %vm672 = vcmp.eq.f32.partialorder %v318, 0.0
    %v673 = vand.u32 %v318, 2147483648
    %v674 = vsel %vm672, %v673, %v671
    %v675 = vrsqrt.pop %v320
    %v676 = vmul.f32 %v320, %v675
    %vm677 = vcmp.eq.f32.partialorder %v320, inf
    %v678 = vsel %vm677, %v320, %v676
    %vm679 = vcmp.eq.f32.partialorder %v320, 0.0
    %v680 = vand.u32 %v320, 2147483648
    %v681 = vsel %vm679, %v680, %v678
    %v682 = vrsqrt.pop %v322
    %v683 = vmul.f32 %v322, %v682
    %vm684 = vcmp.eq.f32.partialorder %v322, inf
    %v685 = vsel %vm684, %v322, %v683
    %vm686 = vcmp.eq.f32.partialorder %v322, 0.0
    %v687 = vand.u32 %v322, 2147483648
    %v688 = vsel %vm686, %v687, %v685
    %v689 = vrsqrt.pop %v324
    %v690 = vmul.f32 %v324, %v689
    %vm691 = vcmp.eq.f32.partialorder %v324, inf
    %v692 = vsel %vm691, %v324, %v690
    %vm693 = vcmp.eq.f32.partialorder %v324, 0.0
    %v694 = vand.u32 %v324, 2147483648
    %v695 = vsel %vm693, %v694, %v692
    %v696 = vrsqrt.pop %v326
    %v697 = vmul.f32 %v326, %v696
    %vm698 = vcmp.eq.f32.partialorder %v326, inf
    %v699 = vsel %vm698, %v326, %v697
    %vm700 = vcmp.eq.f32.partialorder %v326, 0.0
    %v701 = vand.u32 %v326, 2147483648
    %v702 = vsel %vm700, %v701, %v699
    %v703 = vrsqrt.pop %v328
    %v704 = vmul.f32 %v328, %v703
    %vm705 = vcmp.eq.f32.partialorder %v328, inf
    %v706 = vsel %vm705, %v328, %v704
    %vm707 = vcmp.eq.f32.partialorder %v328, 0.0
    %v708 = vand.u32 %v328, 2147483648
    %v709 = vsel %vm707, %v708, %v706
    %v710 = vrsqrt.pop %v330
    %v711 = vmul.f32 %v330, %v710
    %vm712 = vcmp.eq.f32.partialorder %v330, inf
    %v713 = vsel %vm712, %v330, %v711
    %vm714 = vcmp.eq.f32.partialorder %v330, 0.0
    %v715 = vand.u32 %v330, 2147483648
    %v716 = vsel %vm714, %v715, %v713
    %v717 = vrsqrt.pop %v332
    %v718 = vmul.f32 %v332, %v717
    %vm719 = vcmp.eq.f32.partialorder %v332, inf
    %v720 = vsel %vm719, %v332, %v718
    %vm721 = vcmp.eq.f32.partialorder %v332, 0.0
    %v722 = vand.u32 %v332, 2147483648
    %v723 = vsel %vm721, %v722, %v720
    %v724 = vrsqrt.pop %v334
    %v725 = vmul.f32 %v334, %v724
    %vm726 = vcmp.eq.f32.partialorder %v334, inf
    %v727 = vsel %vm726, %v334, %v725
    %vm728 = vcmp.eq.f32.partialorder %v334, 0.0
    %v729 = vand.u32 %v334, 2147483648
    %v730 = vsel %vm728, %v729, %v727
    %v731 = vrsqrt.pop %v336
    %v732 = vmul.f32 %v336, %v731
    %vm733 = vcmp.eq.f32.partialorder %v336, inf
    %v734 = vsel %vm733, %v336, %v732
    %vm735 = vcmp.eq.f32.partialorder %v336, 0.0
    %v736 = vand.u32 %v336, 2147483648
    %v737 = vsel %vm735, %v736, %v734
    %v738 = vrsqrt.pop %v338
    %v739 = vmul.f32 %v338, %v738
    %vm740 = vcmp.eq.f32.partialorder %v338, inf
    %v741 = vsel %vm740, %v338, %v739
    %vm742 = vcmp.eq.f32.partialorder %v338, 0.0
    %v743 = vand.u32 %v338, 2147483648
    %v744 = vsel %vm742, %v743, %v741
    %v745 = vrsqrt.pop %v340
    %v746 = vmul.f32 %v340, %v745
    %vm747 = vcmp.eq.f32.partialorder %v340, inf
    %v748 = vsel %vm747, %v340, %v746
    %vm749 = vcmp.eq.f32.partialorder %v340, 0.0
    %v750 = vand.u32 %v340, 2147483648
    %v751 = vsel %vm749, %v750, %v748
    %v752 = vrsqrt.pop %v342
    %v753 = vmul.f32 %v342, %v752
    %vm754 = vcmp.eq.f32.partialorder %v342, inf
    %v755 = vsel %vm754, %v342, %v753
    %vm756 = vcmp.eq.f32.partialorder %v342, 0.0
    %v757 = vand.u32 %v342, 2147483648
    %v758 = vsel %vm756, %v757, %v755
    %v759 = vrsqrt.pop %v344
    %v760 = vmul.f32 %v344, %v759
    %vm761 = vcmp.eq.f32.partialorder %v344, inf
    %v762 = vsel %vm761, %v344, %v760
    %vm763 = vcmp.eq.f32.partialorder %v344, 0.0
    %v764 = vand.u32 %v344, 2147483648
    %v765 = vsel %vm763, %v764, %v762
    %v766 = vrsqrt.pop %v346
    %v767 = vmul.f32 %v346, %v766
    %vm768 = vcmp.eq.f32.partialorder %v346, inf
    %v769 = vsel %vm768, %v346, %v767
    %vm770 = vcmp.eq.f32.partialorder %v346, 0.0
    %v771 = vand.u32 %v346, 2147483648
    %v772 = vsel %vm770, %v771, %v769
    %v773 = vrsqrt.pop %v348
    %v774 = vmul.f32 %v348, %v773
    %vm775 = vcmp.eq.f32.partialorder %v348, inf
    %v776 = vsel %vm775, %v348, %v774
    %vm777 = vcmp.eq.f32.partialorder %v348, 0.0
    %v778 = vand.u32 %v348, 2147483648
    %v779 = vsel %vm777, %v778, %v776
    %v780 = vrsqrt.pop %v350
    %v781 = vmul.f32 %v350, %v780
    %vm782 = vcmp.eq.f32.partialorder %v350, inf
    %v783 = vsel %vm782, %v350, %v781
    %vm784 = vcmp.eq.f32.partialorder %v350, 0.0
    %v785 = vand.u32 %v350, 2147483648
    %v786 = vsel %vm784, %v785, %v783
    %v787 = vrsqrt.pop %v352
    %v788 = vmul.f32 %v352, %v787
    %vm789 = vcmp.eq.f32.partialorder %v352, inf
    %v790 = vsel %vm789, %v352, %v788
    %vm791 = vcmp.eq.f32.partialorder %v352, 0.0
    %v792 = vand.u32 %v352, 2147483648
    %v793 = vsel %vm791, %v792, %v790
    %v794 = vrsqrt.pop %v354
    %v795 = vmul.f32 %v354, %v794
    %vm796 = vcmp.eq.f32.partialorder %v354, inf
    %v797 = vsel %vm796, %v354, %v795
    %vm798 = vcmp.eq.f32.partialorder %v354, 0.0
    %v799 = vand.u32 %v354, 2147483648
    %v800 = vsel %vm798, %v799, %v797
    %v801 = vrsqrt.pop %v356
    %v802 = vmul.f32 %v356, %v801
    %vm803 = vcmp.eq.f32.partialorder %v356, inf
    %v804 = vsel %vm803, %v356, %v802
    %vm805 = vcmp.eq.f32.partialorder %v356, 0.0
    %v806 = vand.u32 %v356, 2147483648
    %v807 = vsel %vm805, %v806, %v804
    %v808 = vrsqrt.pop %v358
    %v809 = vmul.f32 %v358, %v808
    %vm810 = vcmp.eq.f32.partialorder %v358, inf
    %v811 = vsel %vm810, %v358, %v809
    %vm812 = vcmp.eq.f32.partialorder %v358, 0.0
    %v813 = vand.u32 %v358, 2147483648
    %v814 = vsel %vm812, %v813, %v811
    %v815 = vrsqrt.pop %v360
    %v816 = vmul.f32 %v360, %v815
    %vm817 = vcmp.eq.f32.partialorder %v360, inf
    %v818 = vsel %vm817, %v360, %v816
    %vm819 = vcmp.eq.f32.partialorder %v360, 0.0
    %v820 = vand.u32 %v360, 2147483648
    %v821 = vsel %vm819, %v820, %v818
    %v822 = vrsqrt.pop %v362
    %v823 = vmul.f32 %v362, %v822
    %vm824 = vcmp.eq.f32.partialorder %v362, inf
    %v825 = vsel %vm824, %v362, %v823
    %vm826 = vcmp.eq.f32.partialorder %v362, 0.0
    %v827 = vand.u32 %v362, 2147483648
    %v828 = vsel %vm826, %v827, %v825
    %v829 = vrsqrt.pop %v364
    %v830 = vmul.f32 %v364, %v829
    %vm831 = vcmp.eq.f32.partialorder %v364, inf
    %v832 = vsel %vm831, %v364, %v830
    %vm833 = vcmp.eq.f32.partialorder %v364, 0.0
    %v834 = vand.u32 %v364, 2147483648
    %v835 = vsel %vm833, %v834, %v832
    %v836 = vrsqrt.pop %v366
    %v837 = vmul.f32 %v366, %v836
    %vm838 = vcmp.eq.f32.partialorder %v366, inf
    %v839 = vsel %vm838, %v366, %v837
    %vm840 = vcmp.eq.f32.partialorder %v366, 0.0
    %v841 = vand.u32 %v366, 2147483648
    %v842 = vsel %vm840, %v841, %v839
    %v843 = vrsqrt.pop %v368
    %v844 = vmul.f32 %v368, %v843
    %vm845 = vcmp.eq.f32.partialorder %v368, inf
    %v846 = vsel %vm845, %v368, %v844
    %vm847 = vcmp.eq.f32.partialorder %v368, 0.0
    %v848 = vand.u32 %v368, 2147483648
    %v849 = vsel %vm847, %v848, %v846
    %v850 = vrsqrt.pop %v370
    %v851 = vmul.f32 %v370, %v850
    %vm852 = vcmp.eq.f32.partialorder %v370, inf
    %v853 = vsel %vm852, %v370, %v851
    %vm854 = vcmp.eq.f32.partialorder %v370, 0.0
    %v855 = vand.u32 %v370, 2147483648
    %v856 = vsel %vm854, %v855, %v853
    %v857 = vrsqrt.pop %v372
    %v858 = vmul.f32 %v372, %v857
    %vm859 = vcmp.eq.f32.partialorder %v372, inf
    %v860 = vsel %vm859, %v372, %v858
    %vm861 = vcmp.eq.f32.partialorder %v372, 0.0
    %v862 = vand.u32 %v372, 2147483648
    %v863 = vsel %vm861, %v862, %v860
    %v864 = vrsqrt.pop %v374
    %v865 = vmul.f32 %v374, %v864
    %vm866 = vcmp.eq.f32.partialorder %v374, inf
    %v867 = vsel %vm866, %v374, %v865
    %vm868 = vcmp.eq.f32.partialorder %v374, 0.0
    %v869 = vand.u32 %v374, 2147483648
    %v870 = vsel %vm868, %v869, %v867
    %v871 = vrsqrt.pop %v376
    %v872 = vmul.f32 %v376, %v871
    %vm873 = vcmp.eq.f32.partialorder %v376, inf
    %v874 = vsel %vm873, %v376, %v872
    %vm875 = vcmp.eq.f32.partialorder %v376, 0.0
    %v876 = vand.u32 %v376, 2147483648
    %v877 = vsel %vm875, %v876, %v874
    %v878 = vrsqrt.pop %v378
    %v879 = vmul.f32 %v378, %v878
    %vm880 = vcmp.eq.f32.partialorder %v378, inf
    %v881 = vsel %vm880, %v378, %v879
    %vm882 = vcmp.eq.f32.partialorder %v378, 0.0
    %v883 = vand.u32 %v378, 2147483648
    %v884 = vsel %vm882, %v883, %v881
    %v885 = vrsqrt.pop %v380
    %v886 = vmul.f32 %v380, %v885
    %vm887 = vcmp.eq.f32.partialorder %v380, inf
    %v888 = vsel %vm887, %v380, %v886
    %vm889 = vcmp.eq.f32.partialorder %v380, 0.0
    %v890 = vand.u32 %v380, 2147483648
    %v891 = vsel %vm889, %v890, %v888
    %v892 = vrsqrt.pop %v382
    %v893 = vmul.f32 %v382, %v892
    %vm894 = vcmp.eq.f32.partialorder %v382, inf
    %v895 = vsel %vm894, %v382, %v893
    %vm896 = vcmp.eq.f32.partialorder %v382, 0.0
    %v897 = vand.u32 %v382, 2147483648
    %v898 = vsel %vm896, %v897, %v895
    %v899 = vrsqrt.pop %v384
    %v900 = vmul.f32 %v384, %v899
    %vm901 = vcmp.eq.f32.partialorder %v384, inf
    %v902 = vsel %vm901, %v384, %v900
    %vm903 = vcmp.eq.f32.partialorder %v384, 0.0
    %v904 = vand.u32 %v384, 2147483648
    %v905 = vsel %vm903, %v904, %v902
    %v906 = vrsqrt.pop %v386
    %v907 = vmul.f32 %v386, %v906
    %vm908 = vcmp.eq.f32.partialorder %v386, inf
    %v909 = vsel %vm908, %v386, %v907
    %vm910 = vcmp.eq.f32.partialorder %v386, 0.0
    %v911 = vand.u32 %v386, 2147483648
    %v912 = vsel %vm910, %v911, %v909
    %v913 = vrsqrt.pop %v388
    %v914 = vmul.f32 %v388, %v913
    %vm915 = vcmp.eq.f32.partialorder %v388, inf
    %v916 = vsel %vm915, %v388, %v914
    %vm917 = vcmp.eq.f32.partialorder %v388, 0.0
    %v918 = vand.u32 %v388, 2147483648
    %v919 = vsel %vm917, %v918, %v916
    %v920 = vrsqrt.pop %v390
    %v921 = vmul.f32 %v390, %v920
    %vm922 = vcmp.eq.f32.partialorder %v390, inf
    %v923 = vsel %vm922, %v390, %v921
    %vm924 = vcmp.eq.f32.partialorder %v390, 0.0
    %v925 = vand.u32 %v390, 2147483648
    %v926 = vsel %vm924, %v925, %v923
    %v927 = vrsqrt.pop %v392
    %v928 = vmul.f32 %v392, %v927
    %vm929 = vcmp.eq.f32.partialorder %v392, inf
    %v930 = vsel %vm929, %v392, %v928
    %vm931 = vcmp.eq.f32.partialorder %v392, 0.0
    %v932 = vand.u32 %v392, 2147483648
    %v933 = vsel %vm931, %v932, %v930
    %v934 = vrsqrt.pop %v394
    %v935 = vmul.f32 %v394, %v934
    %vm936 = vcmp.eq.f32.partialorder %v394, inf
    %v937 = vsel %vm936, %v394, %v935
    %vm938 = vcmp.eq.f32.partialorder %v394, 0.0
    %v939 = vand.u32 %v394, 2147483648
    %v940 = vsel %vm938, %v939, %v937
    %v941 = vrsqrt.pop %v396
    %v942 = vmul.f32 %v396, %v941
    %vm943 = vcmp.eq.f32.partialorder %v396, inf
    %v944 = vsel %vm943, %v396, %v942
    %vm945 = vcmp.eq.f32.partialorder %v396, 0.0
    %v946 = vand.u32 %v396, 2147483648
    %v947 = vsel %vm945, %v946, %v944
    %v948 = vrsqrt.pop %v398
    %v949 = vmul.f32 %v398, %v948
    %vm950 = vcmp.eq.f32.partialorder %v398, inf
    %v951 = vsel %vm950, %v398, %v949
    %vm952 = vcmp.eq.f32.partialorder %v398, 0.0
    %v953 = vand.u32 %v398, 2147483648
    %v954 = vsel %vm952, %v953, %v951
    %v955 = vrsqrt.pop %v400
    %v956 = vmul.f32 %v400, %v955
    %vm957 = vcmp.eq.f32.partialorder %v400, inf
    %v958 = vsel %vm957, %v400, %v956
    %vm959 = vcmp.eq.f32.partialorder %v400, 0.0
    %v960 = vand.u32 %v400, 2147483648
    %v961 = vsel %vm959, %v960, %v958
    %v962 = vrsqrt.pop %v402
    %v963 = vmul.f32 %v402, %v962
    %vm964 = vcmp.eq.f32.partialorder %v402, inf
    %v965 = vsel %vm964, %v402, %v963
    %vm966 = vcmp.eq.f32.partialorder %v402, 0.0
    %v967 = vand.u32 %v402, 2147483648
    %v968 = vsel %vm966, %v967, %v965
    %v969 = vrsqrt.pop %v404
    %v970 = vmul.f32 %v404, %v969
    %vm971 = vcmp.eq.f32.partialorder %v404, inf
    %v972 = vsel %vm971, %v404, %v970
    %vm973 = vcmp.eq.f32.partialorder %v404, 0.0
    %v974 = vand.u32 %v404, 2147483648
    %v975 = vsel %vm973, %v974, %v972
    %v976 = vrsqrt.pop %v406
    %v977 = vmul.f32 %v406, %v976
    %vm978 = vcmp.eq.f32.partialorder %v406, inf
    %v979 = vsel %vm978, %v406, %v977
    %vm980 = vcmp.eq.f32.partialorder %v406, 0.0
    %v981 = vand.u32 %v406, 2147483648
    %v982 = vsel %vm980, %v981, %v979
    %v983 = vrsqrt.pop %v408
    %v984 = vmul.f32 %v408, %v983
    %vm985 = vcmp.eq.f32.partialorder %v408, inf
    %v986 = vsel %vm985, %v408, %v984
    %vm987 = vcmp.eq.f32.partialorder %v408, 0.0
    %v988 = vand.u32 %v408, 2147483648
    %v989 = vsel %vm987, %v988, %v986
    %v990 = vrsqrt.pop %v410
    %v991 = vmul.f32 %v410, %v990
    %vm992 = vcmp.eq.f32.partialorder %v410, inf
    %v993 = vsel %vm992, %v410, %v991
    %vm994 = vcmp.eq.f32.partialorder %v410, 0.0
    %v995 = vand.u32 %v410, 2147483648
    %v996 = vsel %vm994, %v995, %v993
    %v997 = vrsqrt.pop %v412
    %v998 = vmul.f32 %v412, %v997
    %vm999 = vcmp.eq.f32.partialorder %v412, inf
    %v1000 = vsel %vm999, %v412, %v998
    %vm1001 = vcmp.eq.f32.partialorder %v412, 0.0
    %v1002 = vand.u32 %v412, 2147483648
    %v1003 = vsel %vm1001, %v1002, %v1000
    %v1004 = vrsqrt.pop %v414
    %v1005 = vmul.f32 %v414, %v1004
    %vm1006 = vcmp.eq.f32.partialorder %v414, inf
    %v1007 = vsel %vm1006, %v414, %v1005
    %vm1008 = vcmp.eq.f32.partialorder %v414, 0.0
    %v1009 = vand.u32 %v414, 2147483648
    %v1010 = vsel %vm1008, %v1009, %v1007
    %v1011 = vrsqrt.pop %v416
    %v1012 = vmul.f32 %v416, %v1011
    %vm1013 = vcmp.eq.f32.partialorder %v416, inf
    %v1014 = vsel %vm1013, %v416, %v1012
    %vm1015 = vcmp.eq.f32.partialorder %v416, 0.0
    %v1016 = vand.u32 %v416, 2147483648
    %v1017 = vsel %vm1015, %v1016, %v1014
    %v1018 = vrsqrt.pop %v418
    %v1019 = vmul.f32 %v418, %v1018
    %vm1020 = vcmp.eq.f32.partialorder %v418, inf
    %v1021 = vsel %vm1020, %v418, %v1019
    %vm1022 = vcmp.eq.f32.partialorder %v418, 0.0
    %v1023 = vand.u32 %v418, 2147483648
    %v1024 = vsel %vm1022, %v1023, %v1021
    %v1025 = vrsqrt.pop %v420
    %v1026 = vmul.f32 %v420, %v1025
    %vm1027 = vcmp.eq.f32.partialorder %v420, inf
    %v1028 = vsel %vm1027, %v420, %v1026
    %vm1029 = vcmp.eq.f32.partialorder %v420, 0.0
    %v1030 = vand.u32 %v420, 2147483648
    %v1031 = vsel %vm1029, %v1030, %v1028
    %v1032 = vrsqrt.pop %v422
    %v1033 = vmul.f32 %v422, %v1032
    %vm1034 = vcmp.eq.f32.partialorder %v422, inf
    %v1035 = vsel %vm1034, %v422, %v1033
    %vm1036 = vcmp.eq.f32.partialorder %v422, 0.0
    %v1037 = vand.u32 %v422, 2147483648
    %v1038 = vsel %vm1036, %v1037, %v1035
    %v1039 = vrsqrt.pop %v424
    %v1040 = vmul.f32 %v424, %v1039
    %vm1041 = vcmp.eq.f32.partialorder %v424, inf
    %v1042 = vsel %vm1041, %v424, %v1040
    %vm1043 = vcmp.eq.f32.partialorder %v424, 0.0
    %v1044 = vand.u32 %v424, 2147483648
    %v1045 = vsel %vm1043, %v1044, %v1042
    %v1046 = vrsqrt.pop %v426
    %v1047 = vmul.f32 %v426, %v1046
    %vm1048 = vcmp.eq.f32.partialorder %v426, inf
    %v1049 = vsel %vm1048, %v426, %v1047
    %vm1050 = vcmp.eq.f32.partialorder %v426, 0.0
    %v1051 = vand.u32 %v426, 2147483648
    %v1052 = vsel %vm1050, %v1051, %v1049
    %v1053 = vrsqrt.pop %v428
    %v1054 = vmul.f32 %v428, %v1053
    %vm1055 = vcmp.eq.f32.partialorder %v428, inf
    %v1056 = vsel %vm1055, %v428, %v1054
    %vm1057 = vcmp.eq.f32.partialorder %v428, 0.0
    %v1058 = vand.u32 %v428, 2147483648
    %v1059 = vsel %vm1057, %v1058, %v1056
    %v1060 = vrsqrt.pop %v430
    %v1061 = vmul.f32 %v430, %v1060
    %vm1062 = vcmp.eq.f32.partialorder %v430, inf
    %v1063 = vsel %vm1062, %v430, %v1061
    %vm1064 = vcmp.eq.f32.partialorder %v430, 0.0
    %v1065 = vand.u32 %v430, 2147483648
    %v1066 = vsel %vm1064, %v1065, %v1063
    %v1067 = vrsqrt.pop %v432
    %v1068 = vmul.f32 %v432, %v1067
    %vm1069 = vcmp.eq.f32.partialorder %v432, inf
    %v1070 = vsel %vm1069, %v432, %v1068
    %vm1071 = vcmp.eq.f32.partialorder %v432, 0.0
    %v1072 = vand.u32 %v432, 2147483648
    %v1073 = vsel %vm1071, %v1072, %v1070
    %v1074 = vrsqrt.pop %v434
    %v1075 = vmul.f32 %v434, %v1074
    %vm1076 = vcmp.eq.f32.partialorder %v434, inf
    %v1077 = vsel %vm1076, %v434, %v1075
    %vm1078 = vcmp.eq.f32.partialorder %v434, 0.0
    %v1079 = vand.u32 %v434, 2147483648
    %v1080 = vsel %vm1078, %v1079, %v1077
    %v1081 = vrsqrt.pop %v436
    %v1082 = vmul.f32 %v436, %v1081
    %vm1083 = vcmp.eq.f32.partialorder %v436, inf
    %v1084 = vsel %vm1083, %v436, %v1082
    %vm1085 = vcmp.eq.f32.partialorder %v436, 0.0
    %v1086 = vand.u32 %v436, 2147483648
    %v1087 = vsel %vm1085, %v1086, %v1084
    %v1088 = vrsqrt.pop %v438
    %v1089 = vmul.f32 %v438, %v1088
    %vm1090 = vcmp.eq.f32.partialorder %v438, inf
    %v1091 = vsel %vm1090, %v438, %v1089
    %vm1092 = vcmp.eq.f32.partialorder %v438, 0.0
    %v1093 = vand.u32 %v438, 2147483648
    %v1094 = vsel %vm1092, %v1093, %v1091
    %v1095 = vrsqrt.pop %v440
    %v1096 = vmul.f32 %v440, %v1095
    %vm1097 = vcmp.eq.f32.partialorder %v440, inf
    %v1098 = vsel %vm1097, %v440, %v1096
    %vm1099 = vcmp.eq.f32.partialorder %v440, 0.0
    %v1100 = vand.u32 %v440, 2147483648
    %v1101 = vsel %vm1099, %v1100, %v1098
    %v1102 = vrsqrt.pop %v442
    %v1103 = vmul.f32 %v442, %v1102
    %vm1104 = vcmp.eq.f32.partialorder %v442, inf
    %v1105 = vsel %vm1104, %v442, %v1103
    %vm1106 = vcmp.eq.f32.partialorder %v442, 0.0
    %v1107 = vand.u32 %v442, 2147483648
    %v1108 = vsel %vm1106, %v1107, %v1105
    %v1109 = vrsqrt.pop %v444
    %v1110 = vmul.f32 %v444, %v1109
    %vm1111 = vcmp.eq.f32.partialorder %v444, inf
    %v1112 = vsel %vm1111, %v444, %v1110
    %vm1113 = vcmp.eq.f32.partialorder %v444, 0.0
    %v1114 = vand.u32 %v444, 2147483648
    %v1115 = vsel %vm1113, %v1114, %v1112
    %v1116 = vrsqrt.pop %v446
    %v1117 = vmul.f32 %v446, %v1116
    %vm1118 = vcmp.eq.f32.partialorder %v446, inf
    %v1119 = vsel %vm1118, %v446, %v1117
    %vm1120 = vcmp.eq.f32.partialorder %v446, 0.0
    %v1121 = vand.u32 %v446, 2147483648
    %v1122 = vsel %vm1120, %v1121, %v1119
    %v1123 = vrsqrt.pop %v448
    %v1124 = vmul.f32 %v448, %v1123
    %vm1125 = vcmp.eq.f32.partialorder %v448, inf
    %v1126 = vsel %vm1125, %v448, %v1124
    %vm1127 = vcmp.eq.f32.partialorder %v448, 0.0
    %v1128 = vand.u32 %v448, 2147483648
    %v1129 = vsel %vm1127, %v1128, %v1126
    %v1130 = vrsqrt.pop %v450
    %v1131 = vmul.f32 %v450, %v1130
    %vm1132 = vcmp.eq.f32.partialorder %v450, inf
    %v1133 = vsel %vm1132, %v450, %v1131
    %vm1134 = vcmp.eq.f32.partialorder %v450, 0.0
    %v1135 = vand.u32 %v450, 2147483648
    %v1136 = vsel %vm1134, %v1135, %v1133
    %v1137 = vrsqrt.pop %v452
    %v1138 = vmul.f32 %v452, %v1137
    %vm1139 = vcmp.eq.f32.partialorder %v452, inf
    %v1140 = vsel %vm1139, %v452, %v1138
    %vm1141 = vcmp.eq.f32.partialorder %v452, 0.0
    %v1142 = vand.u32 %v452, 2147483648
    %v1143 = vsel %vm1141, %v1142, %v1140
    %v1144 = vrsqrt.pop %v454
    %v1145 = vmul.f32 %v454, %v1144
    %vm1146 = vcmp.eq.f32.partialorder %v454, inf
    %v1147 = vsel %vm1146, %v454, %v1145
    %vm1148 = vcmp.eq.f32.partialorder %v454, 0.0
    %v1149 = vand.u32 %v454, 2147483648
    %v1150 = vsel %vm1148, %v1149, %v1147
    %v1151 = vrsqrt.pop %v456
    %v1152 = vmul.f32 %v456, %v1151
    %vm1153 = vcmp.eq.f32.partialorder %v456, inf
    %v1154 = vsel %vm1153, %v456, %v1152
    %vm1155 = vcmp.eq.f32.partialorder %v456, 0.0
    %v1156 = vand.u32 %v456, 2147483648
    %v1157 = vsel %vm1155, %v1156, %v1154
    %v1158 = vrsqrt.pop %v458
    %v1159 = vmul.f32 %v458, %v1158
    %vm1160 = vcmp.eq.f32.partialorder %v458, inf
    %v1161 = vsel %vm1160, %v458, %v1159
    %vm1162 = vcmp.eq.f32.partialorder %v458, 0.0
    %v1163 = vand.u32 %v458, 2147483648
    %v1164 = vsel %vm1162, %v1163, %v1161
    %v1165 = vrsqrt.pop %v460
    %v1166 = vmul.f32 %v460, %v1165
    %vm1167 = vcmp.eq.f32.partialorder %v460, inf
    %v1168 = vsel %vm1167, %v460, %v1166
    %vm1169 = vcmp.eq.f32.partialorder %v460, 0.0
    %v1170 = vand.u32 %v460, 2147483648
    %v1171 = vsel %vm1169, %v1170, %v1168
    %v1172 = vrsqrt.pop %v462
    %v1173 = vmul.f32 %v462, %v1172
    %vm1174 = vcmp.eq.f32.partialorder %v462, inf
    %v1175 = vsel %vm1174, %v462, %v1173
    %vm1176 = vcmp.eq.f32.partialorder %v462, 0.0
    %v1177 = vand.u32 %v462, 2147483648
    %v1178 = vsel %vm1176, %v1177, %v1175
    %v1179 = vrsqrt.pop %v464
    %v1180 = vmul.f32 %v464, %v1179
    %vm1181 = vcmp.eq.f32.partialorder %v464, inf
    %v1182 = vsel %vm1181, %v464, %v1180
    %vm1183 = vcmp.eq.f32.partialorder %v464, 0.0
    %v1184 = vand.u32 %v464, 2147483648
    %v1185 = vsel %vm1183, %v1184, %v1182
    %v1186 = vrsqrt.pop %v466
    %v1187 = vmul.f32 %v466, %v1186
    %vm1188 = vcmp.eq.f32.partialorder %v466, inf
    %v1189 = vsel %vm1188, %v466, %v1187
    %vm1190 = vcmp.eq.f32.partialorder %v466, 0.0
    %v1191 = vand.u32 %v466, 2147483648
    %v1192 = vsel %vm1190, %v1191, %v1189
    %v1193 = vrsqrt.pop %v468
    %v1194 = vmul.f32 %v468, %v1193
    %vm1195 = vcmp.eq.f32.partialorder %v468, inf
    %v1196 = vsel %vm1195, %v468, %v1194
    %vm1197 = vcmp.eq.f32.partialorder %v468, 0.0
    %v1198 = vand.u32 %v468, 2147483648
    %v1199 = vsel %vm1197, %v1198, %v1196
    %v1200 = vrsqrt.pop %v470
    %v1201 = vmul.f32 %v470, %v1200
    %vm1202 = vcmp.eq.f32.partialorder %v470, inf
    %v1203 = vsel %vm1202, %v470, %v1201
    %vm1204 = vcmp.eq.f32.partialorder %v470, 0.0
    %v1205 = vand.u32 %v470, 2147483648
    %v1206 = vsel %vm1204, %v1205, %v1203
    %v1207 = vrsqrt.pop %v472
    %v1208 = vmul.f32 %v472, %v1207
    %vm1209 = vcmp.eq.f32.partialorder %v472, inf
    %v1210 = vsel %vm1209, %v472, %v1208
    %vm1211 = vcmp.eq.f32.partialorder %v472, 0.0
    %v1212 = vand.u32 %v472, 2147483648
    %v1213 = vsel %vm1211, %v1212, %v1210
    %v1214 = vrsqrt.pop %v474
    %v1215 = vmul.f32 %v474, %v1214
    %vm1216 = vcmp.eq.f32.partialorder %v474, inf
    %v1217 = vsel %vm1216, %v474, %v1215
    %vm1218 = vcmp.eq.f32.partialorder %v474, 0.0
    %v1219 = vand.u32 %v474, 2147483648
    %v1220 = vsel %vm1218, %v1219, %v1217
    %v1221 = vrsqrt.pop %v476
    %v1222 = vmul.f32 %v476, %v1221
    %vm1223 = vcmp.eq.f32.partialorder %v476, inf
    %v1224 = vsel %vm1223, %v476, %v1222
    %vm1225 = vcmp.eq.f32.partialorder %v476, 0.0
    %v1226 = vand.u32 %v476, 2147483648
    %v1227 = vsel %vm1225, %v1226, %v1224
    %v1228 = vrsqrt.pop %v478
    %v1229 = vmul.f32 %v478, %v1228
    %vm1230 = vcmp.eq.f32.partialorder %v478, inf
    %v1231 = vsel %vm1230, %v478, %v1229
    %vm1232 = vcmp.eq.f32.partialorder %v478, 0.0
    %v1233 = vand.u32 %v478, 2147483648
    %v1234 = vsel %vm1232, %v1233, %v1231
    %v1235 = vrsqrt.pop %v480
    %v1236 = vmul.f32 %v480, %v1235
    %vm1237 = vcmp.eq.f32.partialorder %v480, inf
    %v1238 = vsel %vm1237, %v480, %v1236
    %vm1239 = vcmp.eq.f32.partialorder %v480, 0.0
    %v1240 = vand.u32 %v480, 2147483648
    %v1241 = vsel %vm1239, %v1240, %v1238
    %v1242 = vrsqrt.pop %v482
    %v1243 = vmul.f32 %v482, %v1242
    %vm1244 = vcmp.eq.f32.partialorder %v482, inf
    %v1245 = vsel %vm1244, %v482, %v1243
    %vm1246 = vcmp.eq.f32.partialorder %v482, 0.0
    %v1247 = vand.u32 %v482, 2147483648
    %v1248 = vsel %vm1246, %v1247, %v1245
    %v1249 = vrsqrt.pop %v484
    %v1250 = vmul.f32 %v484, %v1249
    %vm1251 = vcmp.eq.f32.partialorder %v484, inf
    %v1252 = vsel %vm1251, %v484, %v1250
    %vm1253 = vcmp.eq.f32.partialorder %v484, 0.0
    %v1254 = vand.u32 %v484, 2147483648
    %v1255 = vsel %vm1253, %v1254, %v1252
    %v1256 = vrsqrt.pop %v486
    %v1257 = vmul.f32 %v486, %v1256
    %vm1258 = vcmp.eq.f32.partialorder %v486, inf
    %v1259 = vsel %vm1258, %v486, %v1257
    %vm1260 = vcmp.eq.f32.partialorder %v486, 0.0
    %v1261 = vand.u32 %v486, 2147483648
    %v1262 = vsel %vm1260, %v1261, %v1259
    %v1263 = vrsqrt.pop %v488
    %v1264 = vmul.f32 %v488, %v1263
    %vm1265 = vcmp.eq.f32.partialorder %v488, inf
    %v1266 = vsel %vm1265, %v488, %v1264
    %vm1267 = vcmp.eq.f32.partialorder %v488, 0.0
    %v1268 = vand.u32 %v488, 2147483648
    %v1269 = vsel %vm1267, %v1268, %v1266
    %v1270 = vrsqrt.pop %v490
    %v1271 = vmul.f32 %v490, %v1270
    %vm1272 = vcmp.eq.f32.partialorder %v490, inf
    %v1273 = vsel %vm1272, %v490, %v1271
    %vm1274 = vcmp.eq.f32.partialorder %v490, 0.0
    %v1275 = vand.u32 %v490, 2147483648
    %v1276 = vsel %vm1274, %v1275, %v1273
    %v1277 = vrsqrt.pop %v492
    %v1278 = vmul.f32 %v492, %v1277
    %vm1279 = vcmp.eq.f32.partialorder %v492, inf
    %v1280 = vsel %vm1279, %v492, %v1278
    %vm1281 = vcmp.eq.f32.partialorder %v492, 0.0
    %v1282 = vand.u32 %v492, 2147483648
    %v1283 = vsel %vm1281, %v1282, %v1280
    %v1284 = vrsqrt.pop %v494
    %v1285 = vmul.f32 %v494, %v1284
    %vm1286 = vcmp.eq.f32.partialorder %v494, inf
    %v1287 = vsel %vm1286, %v494, %v1285
    %vm1288 = vcmp.eq.f32.partialorder %v494, 0.0
    %v1289 = vand.u32 %v494, 2147483648
    %v1290 = vsel %vm1288, %v1289, %v1287
    %v1291 = vrsqrt.pop %v496
    %v1292 = vmul.f32 %v496, %v1291
    %vm1293 = vcmp.eq.f32.partialorder %v496, inf
    %v1294 = vsel %vm1293, %v496, %v1292
    %vm1295 = vcmp.eq.f32.partialorder %v496, 0.0
    %v1296 = vand.u32 %v496, 2147483648
    %v1297 = vsel %vm1295, %v1296, %v1294
    %v1298 = vrsqrt.pop %v498
    %v1299 = vmul.f32 %v498, %v1298
    %vm1300 = vcmp.eq.f32.partialorder %v498, inf
    %v1301 = vsel %vm1300, %v498, %v1299
    %vm1302 = vcmp.eq.f32.partialorder %v498, 0.0
    %v1303 = vand.u32 %v498, 2147483648
    %v1304 = vsel %vm1302, %v1303, %v1301
    %v1305 = vrsqrt.pop %v500
    %v1306 = vmul.f32 %v500, %v1305
    %vm1307 = vcmp.eq.f32.partialorder %v500, inf
    %v1308 = vsel %vm1307, %v500, %v1306
    %vm1309 = vcmp.eq.f32.partialorder %v500, 0.0
    %v1310 = vand.u32 %v500, 2147483648
    %v1311 = vsel %vm1309, %v1310, %v1308
    %v1312 = vrsqrt.pop %v502
    %v1313 = vmul.f32 %v502, %v1312
    %vm1314 = vcmp.eq.f32.partialorder %v502, inf
    %v1315 = vsel %vm1314, %v502, %v1313
    %vm1316 = vcmp.eq.f32.partialorder %v502, 0.0
    %v1317 = vand.u32 %v502, 2147483648
    %v1318 = vsel %vm1316, %v1317, %v1315
    %v1319 = vrsqrt.pop %v504
    %v1320 = vmul.f32 %v504, %v1319
    %vm1321 = vcmp.eq.f32.partialorder %v504, inf
    %v1322 = vsel %vm1321, %v504, %v1320
    %vm1323 = vcmp.eq.f32.partialorder %v504, 0.0
    %v1324 = vand.u32 %v504, 2147483648
    %v1325 = vsel %vm1323, %v1324, %v1322
    %v1326 = vrsqrt.pop %v506
    %v1327 = vmul.f32 %v506, %v1326
    %vm1328 = vcmp.eq.f32.partialorder %v506, inf
    %v1329 = vsel %vm1328, %v506, %v1327
    %vm1330 = vcmp.eq.f32.partialorder %v506, 0.0
    %v1331 = vand.u32 %v506, 2147483648
    %v1332 = vsel %vm1330, %v1331, %v1329
    %v1333 = vrsqrt.pop %v508
    %v1334 = vmul.f32 %v508, %v1333
    %vm1335 = vcmp.eq.f32.partialorder %v508, inf
    %v1336 = vsel %vm1335, %v508, %v1334
    %vm1337 = vcmp.eq.f32.partialorder %v508, 0.0
    %v1338 = vand.u32 %v508, 2147483648
    %v1339 = vsel %vm1337, %v1338, %v1336
    %v1340 = vrsqrt.pop %v510
    %v1341 = vmul.f32 %v510, %v1340
    %vm1342 = vcmp.eq.f32.partialorder %v510, inf
    %v1343 = vsel %vm1342, %v510, %v1341
    %vm1344 = vcmp.eq.f32.partialorder %v510, 0.0
    %v1345 = vand.u32 %v510, 2147483648
    %v1346 = vsel %vm1344, %v1345, %v1343
    %v1347 = vrsqrt.pop %v512
    %v1348 = vmul.f32 %v512, %v1347
    %vm1349 = vcmp.eq.f32.partialorder %v512, inf
    %v1350 = vsel %vm1349, %v512, %v1348
    %vm1351 = vcmp.eq.f32.partialorder %v512, 0.0
    %v1352 = vand.u32 %v512, 2147483648
    %v1353 = vsel %vm1351, %v1352, %v1350
    %v1354 = vrsqrt.pop %v514
    %v1355 = vmul.f32 %v514, %v1354
    %vm1356 = vcmp.eq.f32.partialorder %v514, inf
    %v1357 = vsel %vm1356, %v514, %v1355
    %vm1358 = vcmp.eq.f32.partialorder %v514, 0.0
    %v1359 = vand.u32 %v514, 2147483648
    %v1360 = vsel %vm1358, %v1359, %v1357
    %v1361 = vrsqrt.pop %v516
    %v1362 = vmul.f32 %v516, %v1361
    %vm1363 = vcmp.eq.f32.partialorder %v516, inf
    %v1364 = vsel %vm1363, %v516, %v1362
    %vm1365 = vcmp.eq.f32.partialorder %v516, 0.0
    %v1366 = vand.u32 %v516, 2147483648
    %v1367 = vsel %vm1365, %v1366, %v1364
    %v1368 = vrsqrt.pop %v518
    %v1369 = vmul.f32 %v518, %v1368
    %vm1370 = vcmp.eq.f32.partialorder %v518, inf
    %v1371 = vsel %vm1370, %v518, %v1369
    %vm1372 = vcmp.eq.f32.partialorder %v518, 0.0
    %v1373 = vand.u32 %v518, 2147483648
    %v1374 = vsel %vm1372, %v1373, %v1371
    %v1375 = vrsqrt.pop %v520
    %v1376 = vmul.f32 %v520, %v1375
    %vm1377 = vcmp.eq.f32.partialorder %v520, inf
    %v1378 = vsel %vm1377, %v520, %v1376
    %vm1379 = vcmp.eq.f32.partialorder %v520, 0.0
    %v1380 = vand.u32 %v520, 2147483648
    %v1381 = vsel %vm1379, %v1380, %v1378
    %v1382 = vrsqrt.pop %v522
    %v1383 = vmul.f32 %v522, %v1382
    %vm1384 = vcmp.eq.f32.partialorder %v522, inf
    %v1385 = vsel %vm1384, %v522, %v1383
    %vm1386 = vcmp.eq.f32.partialorder %v522, 0.0
    %v1387 = vand.u32 %v522, 2147483648
    %v1388 = vsel %vm1386, %v1387, %v1385
    %v1389 = vrsqrt.pop %v524
    %v1390 = vmul.f32 %v524, %v1389
    %vm1391 = vcmp.eq.f32.partialorder %v524, inf
    %v1392 = vsel %vm1391, %v524, %v1390
    %vm1393 = vcmp.eq.f32.partialorder %v524, 0.0
    %v1394 = vand.u32 %v524, 2147483648
    %v1395 = vsel %vm1393, %v1394, %v1392
    %v1396 = vrsqrt.pop %v526
    %v1397 = vmul.f32 %v526, %v1396
    %vm1398 = vcmp.eq.f32.partialorder %v526, inf
    %v1399 = vsel %vm1398, %v526, %v1397
    %vm1400 = vcmp.eq.f32.partialorder %v526, 0.0
    %v1401 = vand.u32 %v526, 2147483648
    %v1402 = vsel %vm1400, %v1401, %v1399
    %v1403 = vrsqrt.pop %v528
    %v1404 = vmul.f32 %v528, %v1403
    %vm1405 = vcmp.eq.f32.partialorder %v528, inf
    %v1406 = vsel %vm1405, %v528, %v1404
    %vm1407 = vcmp.eq.f32.partialorder %v528, 0.0
    %v1408 = vand.u32 %v528, 2147483648
    %v1409 = vsel %vm1407, %v1408, %v1406
    %v1410 = vrsqrt.pop %v530
    %v1411 = vmul.f32 %v530, %v1410
    %vm1412 = vcmp.eq.f32.partialorder %v530, inf
    %v1413 = vsel %vm1412, %v530, %v1411
    %vm1414 = vcmp.eq.f32.partialorder %v530, 0.0
    %v1415 = vand.u32 %v530, 2147483648
    %v1416 = vsel %vm1414, %v1415, %v1413
    %v1417 = vrsqrt.pop %v532
    %v1418 = vmul.f32 %v532, %v1417
    %vm1419 = vcmp.eq.f32.partialorder %v532, inf
    %v1420 = vsel %vm1419, %v532, %v1418
    %vm1421 = vcmp.eq.f32.partialorder %v532, 0.0
    %v1422 = vand.u32 %v532, 2147483648
    %v1423 = vsel %vm1421, %v1422, %v1420
    %v1424 = vrsqrt.pop %v534
    %v1425 = vmul.f32 %v534, %v1424
    %vm1426 = vcmp.eq.f32.partialorder %v534, inf
    %v1427 = vsel %vm1426, %v534, %v1425
    %vm1428 = vcmp.eq.f32.partialorder %v534, 0.0
    %v1429 = vand.u32 %v534, 2147483648
    %v1430 = vsel %vm1428, %v1429, %v1427
    %v1431 = vrcp.pop %v541
    %v1432 = vmul.f32 0.5, %v1431
    %v1433 = vrcp.pop %v548
    %v1434 = vmul.f32 0.5, %v1433
    %v1435 = vrcp.pop %v555
    %v1436 = vmul.f32 0.5, %v1435
    %v1437 = vrcp.pop %v562
    %v1438 = vmul.f32 0.5, %v1437
    %v1439 = vrcp.pop %v569
    %v1440 = vmul.f32 0.5, %v1439
    %v1441 = vrcp.pop %v576
    %v1442 = vmul.f32 0.5, %v1441
    %v1443 = vrcp.pop %v583
    %v1444 = vmul.f32 0.5, %v1443
    %v1445 = vrcp.pop %v590
    %v1446 = vmul.f32 0.5, %v1445
    %v1447 = vrcp.pop %v597
    %v1448 = vmul.f32 0.5, %v1447
    %v1449 = vrcp.pop %v604
    %v1450 = vmul.f32 0.5, %v1449
    %v1451 = vrcp.pop %v611
    %v1452 = vmul.f32 0.5, %v1451
    %v1453 = vrcp.pop %v618
    %v1454 = vmul.f32 0.5, %v1453
    %v1455 = vrcp.pop %v625
    %v1456 = vmul.f32 0.5, %v1455
    %v1457 = vrcp.pop %v632
    %v1458 = vmul.f32 0.5, %v1457
    %v1459 = vrcp.pop %v639
    %v1460 = vmul.f32 0.5, %v1459
    %v1461 = vrcp.pop %v646
    %v1462 = vmul.f32 0.5, %v1461
    %v1463 = vrcp.pop %v653
    %v1464 = vmul.f32 0.5, %v1463
    %v1465 = vrcp.pop %v660
    %v1466 = vmul.f32 0.5, %v1465
    %v1467 = vrcp.pop %v667
    %v1468 = vmul.f32 0.5, %v1467
    %v1469 = vrcp.pop %v674
    %v1470 = vmul.f32 0.5, %v1469
    %v1471 = vrcp.pop %v681
    %v1472 = vmul.f32 0.5, %v1471
    %v1473 = vrcp.pop %v688
    %v1474 = vmul.f32 0.5, %v1473
    %v1475 = vrcp.pop %v695
    %v1476 = vmul.f32 0.5, %v1475
    %v1477 = vrcp.pop %v702
    %v1478 = vmul.f32 0.5, %v1477
    %v1479 = vrcp.pop %v709
    %v1480 = vmul.f32 0.5, %v1479
    %v1481 = vrcp.pop %v716
    %v1482 = vmul.f32 0.5, %v1481
    %v1483 = vrcp.pop %v723
    %v1484 = vmul.f32 0.5, %v1483
    %v1485 = vrcp.pop %v730
    %v1486 = vmul.f32 0.5, %v1485
    %v1487 = vrcp.pop %v737
    %v1488 = vmul.f32 0.5, %v1487
    %v1489 = vrcp.pop %v744
    %v1490 = vmul.f32 0.5, %v1489
    %v1491 = vrcp.pop %v751
    %v1492 = vmul.f32 0.5, %v1491
    %v1493 = vrcp.pop %v758
    %v1494 = vmul.f32 0.5, %v1493
    %v1495 = vrcp.pop %v765
    %v1496 = vmul.f32 0.5, %v1495
    %v1497 = vrcp.pop %v772
    %v1498 = vmul.f32 0.5, %v1497
    %v1499 = vrcp.pop %v779
    %v1500 = vmul.f32 0.5, %v1499
    %v1501 = vrcp.pop %v786
    %v1502 = vmul.f32 0.5, %v1501
    %v1503 = vrcp.pop %v793
    %v1504 = vmul.f32 0.5, %v1503
    %v1505 = vrcp.pop %v800
    %v1506 = vmul.f32 0.5, %v1505
    %v1507 = vrcp.pop %v807
    %v1508 = vmul.f32 0.5, %v1507
    %v1509 = vrcp.pop %v814
    %v1510 = vmul.f32 0.5, %v1509
    %v1511 = vrcp.pop %v821
    %v1512 = vmul.f32 0.5, %v1511
    %v1513 = vrcp.pop %v828
    %v1514 = vmul.f32 0.5, %v1513
    %v1515 = vrcp.pop %v835
    %v1516 = vmul.f32 0.5, %v1515
    %v1517 = vrcp.pop %v842
    %v1518 = vmul.f32 0.5, %v1517
    %v1519 = vrcp.pop %v849
    %v1520 = vmul.f32 0.5, %v1519
    %v1521 = vrcp.pop %v856
    %v1522 = vmul.f32 0.5, %v1521
    %v1523 = vrcp.pop %v863
    %v1524 = vmul.f32 0.5, %v1523
    %v1525 = vrcp.pop %v870
    %v1526 = vmul.f32 0.5, %v1525
    %v1527 = vrcp.pop %v877
    %v1528 = vmul.f32 0.5, %v1527
    %v1529 = vrcp.pop %v884
    %v1530 = vmul.f32 0.5, %v1529
    %v1531 = vrcp.pop %v891
    %v1532 = vmul.f32 0.5, %v1531
    %v1533 = vrcp.pop %v898
    %v1534 = vmul.f32 0.5, %v1533
    %v1535 = vrcp.pop %v905
    %v1536 = vmul.f32 0.5, %v1535
    %v1537 = vrcp.pop %v912
    %v1538 = vmul.f32 0.5, %v1537
    %v1539 = vrcp.pop %v919
    %v1540 = vmul.f32 0.5, %v1539
    %v1541 = vrcp.pop %v926
    %v1542 = vmul.f32 0.5, %v1541
    %v1543 = vrcp.pop %v933
    %v1544 = vmul.f32 0.5, %v1543
    %v1545 = vrcp.pop %v940
    %v1546 = vmul.f32 0.5, %v1545
    %v1547 = vrcp.pop %v947
    %v1548 = vmul.f32 0.5, %v1547
    %v1549 = vrcp.pop %v954
    %v1550 = vmul.f32 0.5, %v1549
    %v1551 = vrcp.pop %v961
    %v1552 = vmul.f32 0.5, %v1551
    %v1553 = vrcp.pop %v968
    %v1554 = vmul.f32 0.5, %v1553
    %v1555 = vrcp.pop %v975
    %v1556 = vmul.f32 0.5, %v1555
    %v1557 = vrcp.pop %v982
    %v1558 = vmul.f32 0.5, %v1557
    %v1559 = vrcp.pop %v989
    %v1560 = vmul.f32 0.5, %v1559
    %v1561 = vrcp.pop %v996
    %v1562 = vmul.f32 0.5, %v1561
    %v1563 = vrcp.pop %v1003
    %v1564 = vmul.f32 0.5, %v1563
    %v1565 = vrcp.pop %v1010
    %v1566 = vmul.f32 0.5, %v1565
    %v1567 = vrcp.pop %v1017
    %v1568 = vmul.f32 0.5, %v1567
    %v1569 = vrcp.pop %v1024
    %v1570 = vmul.f32 0.5, %v1569
    %v1571 = vrcp.pop %v1031
    %v1572 = vmul.f32 0.5, %v1571
    %v1573 = vrcp.pop %v1038
    %v1574 = vmul.f32 0.5, %v1573
    %v1575 = vrcp.pop %v1045
    %v1576 = vmul.f32 0.5, %v1575
    %v1577 = vrcp.pop %v1052
    %v1578 = vmul.f32 0.5, %v1577
    %v1579 = vrcp.pop %v1059
    %v1580 = vmul.f32 0.5, %v1579
    %v1581 = vrcp.pop %v1066
    %v1582 = vmul.f32 0.5, %v1581
    %v1583 = vrcp.pop %v1073
    %v1584 = vmul.f32 0.5, %v1583
    %v1585 = vrcp.pop %v1080
    %v1586 = vmul.f32 0.5, %v1585
    %v1587 = vrcp.pop %v1087
    %v1588 = vmul.f32 0.5, %v1587
    %v1589 = vrcp.pop %v1094
    %v1590 = vmul.f32 0.5, %v1589
    %v1591 = vrcp.pop %v1101
    %v1592 = vmul.f32 0.5, %v1591
    %v1593 = vrcp.pop %v1108
    %v1594 = vmul.f32 0.5, %v1593
    %v1595 = vrcp.pop %v1115
    %v1596 = vmul.f32 0.5, %v1595
    %v1597 = vrcp.pop %v1122
    %v1598 = vmul.f32 0.5, %v1597
    %v1599 = vrcp.pop %v1129
    %v1600 = vmul.f32 0.5, %v1599
    %v1601 = vrcp.pop %v1136
    %v1602 = vmul.f32 0.5, %v1601
    %v1603 = vrcp.pop %v1143
    %v1604 = vmul.f32 0.5, %v1603
    %v1605 = vrcp.pop %v1150
    %v1606 = vmul.f32 0.5, %v1605
    %v1607 = vrcp.pop %v1157
    %v1608 = vmul.f32 0.5, %v1607
    %v1609 = vrcp.pop %v1164
    %v1610 = vmul.f32 0.5, %v1609
    %v1611 = vrcp.pop %v1171
    %v1612 = vmul.f32 0.5, %v1611
    %v1613 = vrcp.pop %v1178
    %v1614 = vmul.f32 0.5, %v1613
    %v1615 = vrcp.pop %v1185
    %v1616 = vmul.f32 0.5, %v1615
    %v1617 = vrcp.pop %v1192
    %v1618 = vmul.f32 0.5, %v1617
    %v1619 = vrcp.pop %v1199
    %v1620 = vmul.f32 0.5, %v1619
    %v1621 = vrcp.pop %v1206
    %v1622 = vmul.f32 0.5, %v1621
    %v1623 = vrcp.pop %v1213
    %v1624 = vmul.f32 0.5, %v1623
    %v1625 = vrcp.pop %v1220
    %v1626 = vmul.f32 0.5, %v1625
    %v1627 = vrcp.pop %v1227
    %v1628 = vmul.f32 0.5, %v1627
    %v1629 = vrcp.pop %v1234
    %v1630 = vmul.f32 0.5, %v1629
    %v1631 = vrcp.pop %v1241
    %v1632 = vmul.f32 0.5, %v1631
    %v1633 = vrcp.pop %v1248
    %v1634 = vmul.f32 0.5, %v1633
    %v1635 = vrcp.pop %v1255
    %v1636 = vmul.f32 0.5, %v1635
    %v1637 = vrcp.pop %v1262
    %v1638 = vmul.f32 0.5, %v1637
    %v1639 = vrcp.pop %v1269
    %v1640 = vmul.f32 0.5, %v1639
    %v1641 = vrcp.pop %v1276
    %v1642 = vmul.f32 0.5, %v1641
    %v1643 = vrcp.pop %v1283
    %v1644 = vmul.f32 0.5, %v1643
    %v1645 = vrcp.pop %v1290
    %v1646 = vmul.f32 0.5, %v1645
    %v1647 = vrcp.pop %v1297
    %v1648 = vmul.f32 0.5, %v1647
    %v1649 = vrcp.pop %v1304
    %v1650 = vmul.f32 0.5, %v1649
    %v1651 = vrcp.pop %v1311
    %v1652 = vmul.f32 0.5, %v1651
    %v1653 = vrcp.pop %v1318
    %v1654 = vmul.f32 0.5, %v1653
    %v1655 = vrcp.pop %v1325
    %v1656 = vmul.f32 0.5, %v1655
    %v1657 = vrcp.pop %v1332
    %v1658 = vmul.f32 0.5, %v1657
    %v1659 = vrcp.pop %v1339
    %v1660 = vmul.f32 0.5, %v1659
    %v1661 = vrcp.pop %v1346
    %v1662 = vmul.f32 0.5, %v1661
    %v1663 = vrcp.pop %v1353
    %v1664 = vmul.f32 0.5, %v1663
    %v1665 = vrcp.pop %v1360
    %v1666 = vmul.f32 0.5, %v1665
    %v1667 = vrcp.pop %v1367
    %v1668 = vmul.f32 0.5, %v1667
    %v1669 = vrcp.pop %v1374
    %v1670 = vmul.f32 0.5, %v1669
    %v1671 = vrcp.pop %v1381
    %v1672 = vmul.f32 0.5, %v1671
    %v1673 = vrcp.pop %v1388
    %v1674 = vmul.f32 0.5, %v1673
    %v1675 = vrcp.pop %v1395
    %v1676 = vmul.f32 0.5, %v1675
    %v1677 = vrcp.pop %v1402
    %v1678 = vmul.f32 0.5, %v1677
    %v1679 = vrcp.pop %v1409
    %v1680 = vmul.f32 0.5, %v1679
    %v1681 = vrcp.pop %v1416
    %v1682 = vmul.f32 0.5, %v1681
    %v1683 = vrcp.pop %v1423
    %v1684 = vmul.f32 0.5, %v1683
    %v1685 = vrcp.pop %v1430
    %v1686 = vmul.f32 0.5, %v1685
    %v1687 = vmin.f32 %v1432, 1.0
    %v1688 = vmin.f32 %v1434, 1.0
    %v1689 = vmin.f32 %v1436, 1.0
    %v1690 = vmin.f32 %v1438, 1.0
    %v1691 = vmin.f32 %v1440, 1.0
    %v1692 = vmin.f32 %v1442, 1.0
    %v1693 = vmin.f32 %v1444, 1.0
    %v1694 = vmin.f32 %v1446, 1.0
    %v1695 = vmin.f32 %v1448, 1.0
    %v1696 = vmin.f32 %v1450, 1.0
    %v1697 = vmin.f32 %v1452, 1.0
    %v1698 = vmin.f32 %v1454, 1.0
    %v1699 = vmin.f32 %v1456, 1.0
    %v1700 = vmin.f32 %v1458, 1.0
    %v1701 = vmin.f32 %v1460, 1.0
    %v1702 = vmin.f32 %v1462, 1.0
    %v1703 = vmin.f32 %v1464, 1.0
    %v1704 = vmin.f32 %v1466, 1.0
    %v1705 = vmin.f32 %v1468, 1.0
    %v1706 = vmin.f32 %v1470, 1.0
    %v1707 = vmin.f32 %v1472, 1.0
    %v1708 = vmin.f32 %v1474, 1.0
    %v1709 = vmin.f32 %v1476, 1.0
    %v1710 = vmin.f32 %v1478, 1.0
    %v1711 = vmin.f32 %v1480, 1.0
    %v1712 = vmin.f32 %v1482, 1.0
    %v1713 = vmin.f32 %v1484, 1.0
    %v1714 = vmin.f32 %v1486, 1.0
    %v1715 = vmin.f32 %v1488, 1.0
    %v1716 = vmin.f32 %v1490, 1.0
    %v1717 = vmin.f32 %v1492, 1.0
    %v1718 = vmin.f32 %v1494, 1.0
    %v1719 = vmin.f32 %v1496, 1.0
    %v1720 = vmin.f32 %v1498, 1.0
    %v1721 = vmin.f32 %v1500, 1.0
    %v1722 = vmin.f32 %v1502, 1.0
    %v1723 = vmin.f32 %v1504, 1.0
    %v1724 = vmin.f32 %v1506, 1.0
    %v1725 = vmin.f32 %v1508, 1.0
    %v1726 = vmin.f32 %v1510, 1.0
    %v1727 = vmin.f32 %v1512, 1.0
    %v1728 = vmin.f32 %v1514, 1.0
    %v1729 = vmin.f32 %v1516, 1.0
    %v1730 = vmin.f32 %v1518, 1.0
    %v1731 = vmin.f32 %v1520, 1.0
    %v1732 = vmin.f32 %v1522, 1.0
    %v1733 = vmin.f32 %v1524, 1.0
    %v1734 = vmin.f32 %v1526, 1.0
    %v1735 = vmin.f32 %v1528, 1.0
    %v1736 = vmin.f32 %v1530, 1.0
    %v1737 = vmin.f32 %v1532, 1.0
    %v1738 = vmin.f32 %v1534, 1.0
    %v1739 = vmin.f32 %v1536, 1.0
    %v1740 = vmin.f32 %v1538, 1.0
    %v1741 = vmin.f32 %v1540, 1.0
    %v1742 = vmin.f32 %v1542, 1.0
    %v1743 = vmin.f32 %v1544, 1.0
    %v1744 = vmin.f32 %v1546, 1.0
    %v1745 = vmin.f32 %v1548, 1.0
    %v1746 = vmin.f32 %v1550, 1.0
    %v1747 = vmin.f32 %v1552, 1.0
    %v1748 = vmin.f32 %v1554, 1.0
    %v1749 = vmin.f32 %v1556, 1.0
    %v1750 = vmin.f32 %v1558, 1.0
    %v1751 = vmin.f32 %v1560, 1.0
    %v1752 = vmin.f32 %v1562, 1.0
    %v1753 = vmin.f32 %v1564, 1.0
    %v1754 = vmin.f32 %v1566, 1.0
    %v1755 = vmin.f32 %v1568, 1.0
    %v1756 = vmin.f32 %v1570, 1.0
    %v1757 = vmin.f32 %v1572, 1.0
    %v1758 = vmin.f32 %v1574, 1.0
    %v1759 = vmin.f32 %v1576, 1.0
    %v1760 = vmin.f32 %v1578, 1.0
    %v1761 = vmin.f32 %v1580, 1.0
    %v1762 = vmin.f32 %v1582, 1.0
    %v1763 = vmin.f32 %v1584, 1.0
    %v1764 = vmin.f32 %v1586, 1.0
    %v1765 = vmin.f32 %v1588, 1.0
    %v1766 = vmin.f32 %v1590, 1.0
    %v1767 = vmin.f32 %v1592, 1.0
    %v1768 = vmin.f32 %v1594, 1.0
    %v1769 = vmin.f32 %v1596, 1.0
    %v1770 = vmin.f32 %v1598, 1.0
    %v1771 = vmin.f32 %v1600, 1.0
    %v1772 = vmin.f32 %v1602, 1.0
    %v1773 = vmin.f32 %v1604, 1.0
    %v1774 = vmin.f32 %v1606, 1.0
    %v1775 = vmin.f32 %v1608, 1.0
    %v1776 = vmin.f32 %v1610, 1.0
    %v1777 = vmin.f32 %v1612, 1.0
    %v1778 = vmin.f32 %v1614, 1.0
    %v1779 = vmin.f32 %v1616, 1.0
    %v1780 = vmin.f32 %v1618, 1.0
    %v1781 = vmin.f32 %v1620, 1.0
    %v1782 = vmin.f32 %v1622, 1.0
    %v1783 = vmin.f32 %v1624, 1.0
    %v1784 = vmin.f32 %v1626, 1.0
    %v1785 = vmin.f32 %v1628, 1.0
    %v1786 = vmin.f32 %v1630, 1.0
    %v1787 = vmin.f32 %v1632, 1.0
    %v1788 = vmin.f32 %v1634, 1.0
    %v1789 = vmin.f32 %v1636, 1.0
    %v1790 = vmin.f32 %v1638, 1.0
    %v1791 = vmin.f32 %v1640, 1.0
    %v1792 = vmin.f32 %v1642, 1.0
    %v1793 = vmin.f32 %v1644, 1.0
    %v1794 = vmin.f32 %v1646, 1.0
    %v1795 = vmin.f32 %v1648, 1.0
    %v1796 = vmin.f32 %v1650, 1.0
    %v1797 = vmin.f32 %v1652, 1.0
    %v1798 = vmin.f32 %v1654, 1.0
    %v1799 = vmin.f32 %v1656, 1.0
    %v1800 = vmin.f32 %v1658, 1.0
    %v1801 = vmin.f32 %v1660, 1.0
    %v1802 = vmin.f32 %v1662, 1.0
    %v1803 = vmin.f32 %v1664, 1.0
    %v1804 = vmin.f32 %v1666, 1.0
    %v1805 = vmin.f32 %v1668, 1.0
    %v1806 = vmin.f32 %v1670, 1.0
    %v1807 = vmin.f32 %v1672, 1.0
    %v1808 = vmin.f32 %v1674, 1.0
    %v1809 = vmin.f32 %v1676, 1.0
    %v1810 = vmin.f32 %v1678, 1.0
    %v1811 = vmin.f32 %v1680, 1.0
    %v1812 = vmin.f32 %v1682, 1.0
    %v1813 = vmin.f32 %v1684, 1.0
    %v1814 = vmin.f32 %v1686, 1.0
    %v1815 = vmul.f32 %v23, %v1687
    %v1816 = vmul.f32 %v24, %v1688
    %v1817 = vmul.f32 %v25, %v1689
    %v1818 = vmul.f32 %v26, %v1690
    %v1819 = vmul.f32 %v27, %v1691
    %v1820 = vmul.f32 %v28, %v1692
    %v1821 = vmul.f32 %v29, %v1693
    %v1822 = vmul.f32 %v30, %v1694
    %v1823 = vmul.f32 %v31, %v1695
    %v1824 = vmul.f32 %v32, %v1696
    %v1825 = vmul.f32 %v33, %v1697
    %v1826 = vmul.f32 %v34, %v1698
    %v1827 = vmul.f32 %v35, %v1699
    %v1828 = vmul.f32 %v36, %v1700
    %v1829 = vmul.f32 %v37, %v1701
    %v1830 = vmul.f32 %v38, %v1702
    %v1831 = vmul.f32 %v39, %v1703
    %v1832 = vmul.f32 %v40, %v1704
    %v1833 = vmul.f32 %v41, %v1705
    %v1834 = vmul.f32 %v42, %v1706
    %v1835 = vmul.f32 %v43, %v1707
    %v1836 = vmul.f32 %v44, %v1708
    %v1837 = vmul.f32 %v45, %v1709
    %v1838 = vmul.f32 %v46, %v1710
    %v1839 = vmul.f32 %v47, %v1711
    %v1840 = vmul.f32 %v48, %v1712
    %v1841 = vmul.f32 %v49, %v1713
    %v1842 = vmul.f32 %v50, %v1714
    %v1843 = vmul.f32 %v51, %v1715
    %v1844 = vmul.f32 %v52, %v1716
    %v1845 = vmul.f32 %v53, %v1717
    %v1846 = vmul.f32 %v54, %v1718
    %v1847 = vmul.f32 %v55, %v1719
    %v1848 = vmul.f32 %v56, %v1720
    %v1849 = vmul.f32 %v57, %v1721
    %v1850 = vmul.f32 %v58, %v1722
    %v1851 = vmul.f32 %v59, %v1723
    %v1852 = vmul.f32 %v60, %v1724
    %v1853 = vmul.f32 %v61, %v1725
    %v1854 = vmul.f32 %v62, %v1726
    %v1855 = vmul.f32 %v63, %v1727
    %v1856 = vmul.f32 %v64, %v1728
    %v1857 = vmul.f32 %v65, %v1729
    %v1858 = vmul.f32 %v66, %v1730
    %v1859 = vmul.f32 %v67, %v1731
    %v1860 = vmul.f32 %v68, %v1732
    %v1861 = vmul.f32 %v69, %v1733
    %v1862 = vmul.f32 %v70, %v1734
    %v1863 = vmul.f32 %v71, %v1735
    %v1864 = vmul.f32 %v72, %v1736
    %v1865 = vmul.f32 %v73, %v1737
    %v1866 = vmul.f32 %v74, %v1738
    %v1867 = vmul.f32 %v75, %v1739
    %v1868 = vmul.f32 %v76, %v1740
    %v1869 = vmul.f32 %v77, %v1741
    %v1870 = vmul.f32 %v78, %v1742
    %v1871 = vmul.f32 %v79, %v1743
    %v1872 = vmul.f32 %v80, %v1744
    %v1873 = vmul.f32 %v81, %v1745
    %v1874 = vmul.f32 %v82, %v1746
    %v1875 = vmul.f32 %v83, %v1747
    %v1876 = vmul.f32 %v84, %v1748
    %v1877 = vmul.f32 %v85, %v1749
    %v1878 = vmul.f32 %v86, %v1750
    %v1879 = vmul.f32 %v87, %v1751
    %v1880 = vmul.f32 %v88, %v1752
    %v1881 = vmul.f32 %v89, %v1753
    %v1882 = vmul.f32 %v90, %v1754
    %v1883 = vmul.f32 %v91, %v1755
    %v1884 = vmul.f32 %v92, %v1756
    %v1885 = vmul.f32 %v93, %v1757
    %v1886 = vmul.f32 %v94, %v1758
    %v1887 = vmul.f32 %v95, %v1759
    %v1888 = vmul.f32 %v96, %v1760
    %v1889 = vmul.f32 %v97, %v1761
    %v1890 = vmul.f32 %v98, %v1762
    %v1891 = vmul.f32 %v99, %v1763
    %v1892 = vmul.f32 %v100, %v1764
    %v1893 = vmul.f32 %v101, %v1765
    %v1894 = vmul.f32 %v102, %v1766
    %v1895 = vmul.f32 %v103, %v1767
    %v1896 = vmul.f32 %v104, %v1768
    %v1897 = vmul.f32 %v105, %v1769
    %v1898 = vmul.f32 %v106, %v1770
    %v1899 = vmul.f32 %v107, %v1771
    %v1900 = vmul.f32 %v108, %v1772
    %v1901 = vmul.f32 %v109, %v1773
    %v1902 = vmul.f32 %v110, %v1774
    %v1903 = vmul.f32 %v111, %v1775
    %v1904 = vmul.f32 %v112, %v1776
    %v1905 = vmul.f32 %v113, %v1777
    %v1906 = vmul.f32 %v114, %v1778
    %v1907 = vmul.f32 %v115, %v1779
    %v1908 = vmul.f32 %v116, %v1780
    %v1909 = vmul.f32 %v117, %v1781
    %v1910 = vmul.f32 %v118, %v1782
    %v1911 = vmul.f32 %v119, %v1783
    %v1912 = vmul.f32 %v120, %v1784
    %v1913 = vmul.f32 %v121, %v1785
    %v1914 = vmul.f32 %v122, %v1786
    %v1915 = vmul.f32 %v123, %v1787
    %v1916 = vmul.f32 %v124, %v1788
    %v1917 = vmul.f32 %v125, %v1789
    %v1918 = vmul.f32 %v126, %v1790
    %v1919 = vmul.f32 %v127, %v1791
    %v1920 = vmul.f32 %v128, %v1792
    %v1921 = vmul.f32 %v129, %v1793
    %v1922 = vmul.f32 %v130, %v1794
    %v1923 = vmul.f32 %v131, %v1795
    %v1924 = vmul.f32 %v132, %v1796
    %v1925 = vmul.f32 %v133, %v1797
    %v1926 = vmul.f32 %v134, %v1798
    %v1927 = vmul.f32 %v135, %v1799
    %v1928 = vmul.f32 %v136, %v1800
    %v1929 = vmul.f32 %v137, %v1801
    %v1930 = vmul.f32 %v138, %v1802
    %v1931 = vmul.f32 %v139, %v1803
    %v1932 = vmul.f32 %v140, %v1804
    %v1933 = vmul.f32 %v141, %v1805
    %v1934 = vmul.f32 %v142, %v1806
    %v1935 = vmul.f32 %v143, %v1807
    %v1936 = vmul.f32 %v144, %v1808
    %v1937 = vmul.f32 %v145, %v1809
    %v1938 = vmul.f32 %v146, %v1810
    %v1939 = vmul.f32 %v147, %v1811
    %v1940 = vmul.f32 %v148, %v1812
    %v1941 = vmul.f32 %v149, %v1813
    %v1942 = vmul.f32 %v150, %v1814
    %1943 = vst [vmem:[#allocation5] sm:$0xff] %v1815
    %1944 = vst [vmem:[#allocation5 + $0x8] sm:$0xff] %v1816
    %1945 = vst [vmem:[#allocation5 + $0x10] sm:$0xff] %v1817
    %1946 = vst [vmem:[#allocation5 + $0x18] sm:$0xff] %v1818
    %1947 = vst [vmem:[#allocation5 + $0x20] sm:$0xff] %v1819
    %1948 = vst [vmem:[#allocation5 + $0x28] sm:$0xff] %v1820
    %1949 = vst [vmem:[#allocation5 + $0x30] sm:$0xff] %v1821
    %1950 = vst [vmem:[#allocation5 + $0x38] sm:$0xff] %v1822
    %1951 = vst [vmem:[#allocation5 + $0x40] sm:$0xff] %v1823
    %1952 = vst [vmem:[#allocation5 + $0x48] sm:$0xff] %v1824
    %1953 = vst [vmem:[#allocation5 + $0x50] sm:$0xff] %v1825
    %1954 = vst [vmem:[#allocation5 + $0x58] sm:$0xff] %v1826
    %1955 = vst [vmem:[#allocation5 + $0x60] sm:$0xff] %v1827
    %1956 = vst [vmem:[#allocation5 + $0x68] sm:$0xff] %v1828
    %1957 = vst [vmem:[#allocation5 + $0x70] sm:$0xff] %v1829
    %1958 = vst [vmem:[#allocation5 + $0x78] sm:$0xff] %v1830
    %1959 = vst [vmem:[#allocation5 + $0x80] sm:$0xff] %v1831
    %1960 = vst [vmem:[#allocation5 + $0x88] sm:$0xff] %v1832
    %1961 = vst [vmem:[#allocation5 + $0x90] sm:$0xff] %v1833
    %1962 = vst [vmem:[#allocation5 + $0x98] sm:$0xff] %v1834
    %1963 = vst [vmem:[#allocation5 + $0xa0] sm:$0xff] %v1835
    %1964 = vst [vmem:[#allocation5 + $0xa8] sm:$0xff] %v1836
    %1965 = vst [vmem:[#allocation5 + $0xb0] sm:$0xff] %v1837
    %1966 = vst [vmem:[#allocation5 + $0xb8] sm:$0xff] %v1838
    %1967 = vst [vmem:[#allocation5 + $0xc0] sm:$0xff] %v1839
    %1968 = vst [vmem:[#allocation5 + $0xc8] sm:$0xff] %v1840
    %1969 = vst [vmem:[#allocation5 + $0xd0] sm:$0xff] %v1841
    %1970 = vst [vmem:[#allocation5 + $0xd8] sm:$0xff] %v1842
    %1971 = vst [vmem:[#allocation5 + $0xe0] sm:$0xff] %v1843
    %1972 = vst [vmem:[#allocation5 + $0xe8] sm:$0xff] %v1844
    %1973 = vst [vmem:[#allocation5 + $0xf0] sm:$0xff] %v1845
    %1974 = vst [vmem:[#allocation5 + $0xf8] sm:$0xff] %v1846
    %1975 = vst [vmem:[#allocation5 + $0x100] sm:$0xff] %v1847
    %1976 = vst [vmem:[#allocation5 + $0x108] sm:$0xff] %v1848
    %1977 = vst [vmem:[#allocation5 + $0x110] sm:$0xff] %v1849
    %1978 = vst [vmem:[#allocation5 + $0x118] sm:$0xff] %v1850
    %1979 = vst [vmem:[#allocation5 + $0x120] sm:$0xff] %v1851
    %1980 = vst [vmem:[#allocation5 + $0x128] sm:$0xff] %v1852
    %1981 = vst [vmem:[#allocation5 + $0x130] sm:$0xff] %v1853
    %1982 = vst [vmem:[#allocation5 + $0x138] sm:$0xff] %v1854
    %1983 = vst [vmem:[#allocation5 + $0x140] sm:$0xff] %v1855
    %1984 = vst [vmem:[#allocation5 + $0x148] sm:$0xff] %v1856
    %1985 = vst [vmem:[#allocation5 + $0x150] sm:$0xff] %v1857
    %1986 = vst [vmem:[#allocation5 + $0x158] sm:$0xff] %v1858
    %1987 = vst [vmem:[#allocation5 + $0x160] sm:$0xff] %v1859
    %1988 = vst [vmem:[#allocation5 + $0x168] sm:$0xff] %v1860
    %1989 = vst [vmem:[#allocation5 + $0x170] sm:$0xff] %v1861
    %1990 = vst [vmem:[#allocation5 + $0x178] sm:$0xff] %v1862
    %1991 = vst [vmem:[#allocation5 + $0x180] sm:$0xff] %v1863
    %1992 = vst [vmem:[#allocation5 + $0x188] sm:$0xff] %v1864
    %1993 = vst [vmem:[#allocation5 + $0x190] sm:$0xff] %v1865
    %1994 = vst [vmem:[#allocation5 + $0x198] sm:$0xff] %v1866
    %1995 = vst [vmem:[#allocation5 + $0x1a0] sm:$0xff] %v1867
    %1996 = vst [vmem:[#allocation5 + $0x1a8] sm:$0xff] %v1868
    %1997 = vst [vmem:[#allocation5 + $0x1b0] sm:$0xff] %v1869
    %1998 = vst [vmem:[#allocation5 + $0x1b8] sm:$0xff] %v1870
    %1999 = vst [vmem:[#allocation5 + $0x1c0] sm:$0xff] %v1871
    %2000 = vst [vmem:[#allocation5 + $0x1c8] sm:$0xff] %v1872
    %2001 = vst [vmem:[#allocation5 + $0x1d0] sm:$0xff] %v1873
    %2002 = vst [vmem:[#allocation5 + $0x1d8] sm:$0xff] %v1874
    %2003 = vst [vmem:[#allocation5 + $0x1e0] sm:$0xff] %v1875
    %2004 = vst [vmem:[#allocation5 + $0x1e8] sm:$0xff] %v1876
    %2005 = vst [vmem:[#allocation5 + $0x1f0] sm:$0xff] %v1877
    %2006 = vst [vmem:[#allocation5 + $0x1f8] sm:$0xff] %v1878
    %2007 = vst [vmem:[#allocation5 + $0x200] sm:$0xff] %v1879
    %2008 = vst [vmem:[#allocation5 + $0x208] sm:$0xff] %v1880
    %2009 = vst [vmem:[#allocation5 + $0x210] sm:$0xff] %v1881
    %2010 = vst [vmem:[#allocation5 + $0x218] sm:$0xff] %v1882
    %2011 = vst [vmem:[#allocation5 + $0x220] sm:$0xff] %v1883
    %2012 = vst [vmem:[#allocation5 + $0x228] sm:$0xff] %v1884
    %2013 = vst [vmem:[#allocation5 + $0x230] sm:$0xff] %v1885
    %2014 = vst [vmem:[#allocation5 + $0x238] sm:$0xff] %v1886
    %2015 = vst [vmem:[#allocation5 + $0x240] sm:$0xff] %v1887
    %2016 = vst [vmem:[#allocation5 + $0x248] sm:$0xff] %v1888
    %2017 = vst [vmem:[#allocation5 + $0x250] sm:$0xff] %v1889
    %2018 = vst [vmem:[#allocation5 + $0x258] sm:$0xff] %v1890
    %2019 = vst [vmem:[#allocation5 + $0x260] sm:$0xff] %v1891
    %2020 = vst [vmem:[#allocation5 + $0x268] sm:$0xff] %v1892
    %2021 = vst [vmem:[#allocation5 + $0x270] sm:$0xff] %v1893
    %2022 = vst [vmem:[#allocation5 + $0x278] sm:$0xff] %v1894
    %2023 = vst [vmem:[#allocation5 + $0x280] sm:$0xff] %v1895
    %2024 = vst [vmem:[#allocation5 + $0x288] sm:$0xff] %v1896
    %2025 = vst [vmem:[#allocation5 + $0x290] sm:$0xff] %v1897
    %2026 = vst [vmem:[#allocation5 + $0x298] sm:$0xff] %v1898
    %2027 = vst [vmem:[#allocation5 + $0x2a0] sm:$0xff] %v1899
    %2028 = vst [vmem:[#allocation5 + $0x2a8] sm:$0xff] %v1900
    %2029 = vst [vmem:[#allocation5 + $0x2b0] sm:$0xff] %v1901
    %2030 = vst [vmem:[#allocation5 + $0x2b8] sm:$0xff] %v1902
    %2031 = vst [vmem:[#allocation5 + $0x2c0] sm:$0xff] %v1903
    %2032 = vst [vmem:[#allocation5 + $0x2c8] sm:$0xff] %v1904
    %2033 = vst [vmem:[#allocation5 + $0x2d0] sm:$0xff] %v1905
    %2034 = vst [vmem:[#allocation5 + $0x2d8] sm:$0xff] %v1906
    %2035 = vst [vmem:[#allocation5 + $0x2e0] sm:$0xff] %v1907
    %2036 = vst [vmem:[#allocation5 + $0x2e8] sm:$0xff] %v1908
    %2037 = vst [vmem:[#allocation5 + $0x2f0] sm:$0xff] %v1909
    %2038 = vst [vmem:[#allocation5 + $0x2f8] sm:$0xff] %v1910
    %2039 = vst [vmem:[#allocation5 + $0x300] sm:$0xff] %v1911
    %2040 = vst [vmem:[#allocation5 + $0x308] sm:$0xff] %v1912
    %2041 = vst [vmem:[#allocation5 + $0x310] sm:$0xff] %v1913
    %2042 = vst [vmem:[#allocation5 + $0x318] sm:$0xff] %v1914
    %2043 = vst [vmem:[#allocation5 + $0x320] sm:$0xff] %v1915
    %2044 = vst [vmem:[#allocation5 + $0x328] sm:$0xff] %v1916
    %2045 = vst [vmem:[#allocation5 + $0x330] sm:$0xff] %v1917
    %2046 = vst [vmem:[#allocation5 + $0x338] sm:$0xff] %v1918
    %2047 = vst [vmem:[#allocation5 + $0x340] sm:$0xff] %v1919
    %2048 = vst [vmem:[#allocation5 + $0x348] sm:$0xff] %v1920
    %2049 = vst [vmem:[#allocation5 + $0x350] sm:$0xff] %v1921
    %2050 = vst [vmem:[#allocation5 + $0x358] sm:$0xff] %v1922
    %2051 = vst [vmem:[#allocation5 + $0x360] sm:$0xff] %v1923
    %2052 = vst [vmem:[#allocation5 + $0x368] sm:$0xff] %v1924
    %2053 = vst [vmem:[#allocation5 + $0x370] sm:$0xff] %v1925
    %2054 = vst [vmem:[#allocation5 + $0x378] sm:$0xff] %v1926
    %2055 = vst [vmem:[#allocation5 + $0x380] sm:$0xff] %v1927
    %2056 = vst [vmem:[#allocation5 + $0x388] sm:$0xff] %v1928
    %2057 = vst [vmem:[#allocation5 + $0x390] sm:$0xff] %v1929
    %2058 = vst [vmem:[#allocation5 + $0x398] sm:$0xff] %v1930
    %2059 = vst [vmem:[#allocation5 + $0x3a0] sm:$0xff] %v1931
    %2060 = vst [vmem:[#allocation5 + $0x3a8] sm:$0xff] %v1932
    %2061 = vst [vmem:[#allocation5 + $0x3b0] sm:$0xff] %v1933
    %2062 = vst [vmem:[#allocation5 + $0x3b8] sm:$0xff] %v1934
    %2063 = vst [vmem:[#allocation5 + $0x3c0] sm:$0xff] %v1935
    %2064 = vst [vmem:[#allocation5 + $0x3c8] sm:$0xff] %v1936
    %2065 = vst [vmem:[#allocation5 + $0x3d0] sm:$0xff] %v1937
    %2066 = vst [vmem:[#allocation5 + $0x3d8] sm:$0xff] %v1938
    %2067 = vst [vmem:[#allocation5 + $0x3e0] sm:$0xff] %v1939
    %2068 = vst [vmem:[#allocation5 + $0x3e8] sm:$0xff] %v1940
    %2069 = vst [vmem:[#allocation5 + $0x3f0] sm:$0xff] %v1941
    %2070 = vst [vmem:[#allocation5 + $0x3f8] sm:$0xff] %v1942
    // Predicated region
    $region10: #{tpu_custom_call.1} parent=1 // pred_check
      _
    $region11: #{tpu_custom_call.1} parent=1 // pred_check_branch
      %2072 = sbr.rel (0) target = $region13
    $region12: #{tpu_custom_call.1} parent=1 // pred_region
      %s2074 = ssub.s32 16384, 4864
      %2075 = vsyncadd [#allocation4], %s2074
      %s2076 = sshll.u32 [#allocation5], 4
      %s2077 = int_to_ptr.vmem [resolvable:$true] %s2076
      %2082 = dma.vmem_to_hbm [thread:$0]  %s2077, 4864, %s1, [#allocation4], 128, 128, 8
    $region13: #{tpu_custom_call.1} parent=1 // pred_fallthru
      _
    // Predicated region
    $region14: #{tpu_custom_call.1} parent=1 // pred_check
      _
    $region15: #{tpu_custom_call.1} parent=1 // pred_check_branch
      %2084 = sbr.rel (0) target = $region17
    $region16: #{tpu_custom_call.1} parent=1 // pred_region
      %2085 = dma.done [#allocation4], 16384
    $region17: #{tpu_custom_call.1} parent=1 // pred_fallthru
      _
    %2086 = vsyncpa [#allocation3], 1
    %2087 = vsyncpa [#allocation4], 1

</llo_original>
